<compile_context>
chip_gen: v7x
topology: tpu7x:2x2x1
jax: 0.10.0
libtpu: 0.0.40
codegen_flags: <defaults>
</compile_context>

<pallas_src>
import jax
import jax.numpy as jnp
import numpy as np
from jax.experimental import pallas as pl
from jax.experimental.pallas import tpu as pltpu


# ----------------------------- Pallas kernel --------------------------------


def _make_kernel(num_layers: int, seq_len: int, batch: int, lstm_dim: int):
    L, T, B, H = num_layers, seq_len, batch, lstm_dim

    def kernel(*refs):
        # refs layout:
        #   x_ref (T*B, D),
        #   [w_ih_l (in,4H), w_hh_l (H,4H), b_l (1,4H)] * L,   (pre-transposed,
        #                                                       g-cols pre-scaled x2)
        #   w_fc (H, linear), b_fc (1, linear), w_v (1, linear), b_v (1, 1),
        #   out_ref (T*B, 1),
        #   h_a (T*B, H), h_b (T*B, H), gates_sc (T*B, 4H)
        x_ref = refs[0]
        idx = 1
        layer_refs = []
        for _ in range(L):
            layer_refs.append((refs[idx], refs[idx + 1], refs[idx + 2]))
            idx += 3
        w_fc_ref, b_fc_ref, w_v_ref, b_v_ref = refs[idx : idx + 4]
        idx += 4
        out_ref = refs[idx]
        h_bufs = [refs[idx + 1], refs[idx + 2]]
        gates_sc = refs[idx + 3]

        def run_layer(inp_2d, w_ih_ref, w_hh_ref, b_ref, h_out_ref):
            # Time-independent input projection for the whole sequence:
            # one MXU call + one bias broadcast (hoisted out of the loop).
            gates_sc[...] = (
                jnp.dot(inp_2d, w_ih_ref[...], preferred_element_type=jnp.float32)
                + b_ref[...]
            )
            w_hh = w_hh_ref[...]  # hoist recurrent weight load out of the loop

            h = jnp.zeros((B, H), jnp.float32)  # zero init (get_init_lstm_state)
            c = jnp.zeros((B, H), jnp.float32)

            # Serial recurrence: one (B,H)@(H,4H) matmul + one full-width
            # sigmoid per step. T is small & static -> fully unrolled.
            for t in range(T):
                g = gates_sc[pl.ds(t * B, B), :] + jnp.dot(
                    h, w_hh, preferred_element_type=jnp.float32
                )  # (B, 4H)
                s = jax.nn.sigmoid(g)  # single full-vreg EUP pass
                i_g = s[:, 0 * H : 1 * H]
                f_g = s[:, 1 * H : 2 * H]
                # g-gate columns were pre-scaled by 2: tanh(x) = 2*sigmoid(2x)-1
                g_g = 2.0 * s[:, 2 * H : 3 * H] - 1.0
                o_g = s[:, 3 * H : 4 * H]
                c = f_g * c + i_g * g_g
                h = o_g * jnp.tanh(c)
                h_out_ref[pl.ds(t * B, B), :] = h

        inp = x_ref[...]  # (T*B, state_dim)
        for l, (w_ih_ref, w_hh_ref, b_ref) in enumerate(layer_refs):
            h_out = h_bufs[l % 2]
            run_layer(inp, w_ih_ref, w_hh_ref, b_ref, h_out)
            inp = h_out[...]  # (T*B, H) hidden slab for next layer / head

        # Batched fc + ReLU over all timesteps (one MXU call), then the 1-wide
        # value head as VPU multiply + lane reduction.
        y = jnp.maximum(
            jnp.dot(inp, w_fc_ref[...], preferred_element_type=jnp.float32)
            + b_fc_ref[...],
            0.0,
        )  # (T*B, linear_dim)
        val = jnp.sum(y * w_v_ref[...], axis=-1, keepdims=True) + b_v_ref[...]
        out_ref[...] = val  # single (T*B, 1) writeback

    return kernel


def rnn_value_forward(state, params):
    """state: (T, B, state_dim) float32 -> values (T, B, 1) float32."""
    T, B, D = state.shape
    layers = params["layers"]
    L = len(layers)
    H = layers[0][1].shape[1]  # w_hh: (4H, H)
    linear_dim = params["w_fc"].shape[0]

    # ---- host-side weight prep (layout plumbing, done once) ----
    # Pre-transpose so the contracting dim is leading (no in-kernel .T), and
    # pre-scale the g-gate block by 2 for the tanh-via-sigmoid trick.
    gate_scale = jnp.concatenate(
        [jnp.ones((1, 2 * H)), jnp.full((1, H), 2.0), jnp.ones((1, H))], axis=1
    ).astype(jnp.float32)
    prepped_layers = []
    for (w_ih, w_hh, b) in layers:
        prepped_layers.append(
            (
                jnp.transpose(w_ih) * gate_scale,  # (in_dim, 4H)
                jnp.transpose(w_hh) * gate_scale,  # (H, 4H)
                b * gate_scale,                    # (1, 4H)
            )
        )
    w_fc_t = jnp.transpose(params["w_fc"])  # (H, linear_dim)
    b_fc = params["b_fc"]                   # (1, linear_dim)
    w_v_row = params["w_v"]                 # (1, linear_dim) -- row vector for VPU head
    b_v = params["b_v"]                     # (1, 1)

    x2d = state.reshape(T * B, D)

    def full_spec(arr):
        nd = arr.ndim
        return pl.BlockSpec(arr.shape, lambda i, _nd=nd: (0,) * _nd)

    inputs = [x2d]
    in_specs = [full_spec(x2d)]
    for (w_ih_t, w_hh_t, b) in prepped_layers:
        for w in (w_ih_t, w_hh_t, b):
            inputs.append(w)
            in_specs.append(full_spec(w))
    for w in (w_fc_t, b_fc, w_v_row, b_v):
        inputs.append(w)
        in_specs.append(full_spec(w))

    kernel = _make_kernel(L, T, B, H)

    out2d = pl.pallas_call(
        kernel,
        out_shape=jax.ShapeDtypeStruct((T * B, 1), jnp.float32),
        grid_spec=pltpu.PrefetchScalarGridSpec(
            num_scalar_prefetch=0,
            grid=(1,),
            in_specs=in_specs,
            out_specs=pl.BlockSpec((T * B, 1), lambda i: (0, 0)),
            scratch_shapes=[
                pltpu.VMEM((T * B, H), jnp.float32),      # hidden slab (even layers)
                pltpu.VMEM((T * B, H), jnp.float32),      # hidden slab (odd layers)
                pltpu.VMEM((T * B, 4 * H), jnp.float32),  # batched input-gate pre-acts
            ],
        ),
        compiler_params=pltpu.CompilerParams(
            dimension_semantics=("arbitrary",),
        ),
    )(*inputs)

    return out2d.reshape(T, B, 1)


# --------------------------- pure-JAX reference ------------------------------


def rnn_value_reference(state, params):
    layers = params["layers"]
    L = len(layers)
    H = layers[0][1].shape[1]
    T, B, _ = state.shape
    h0 = jnp.zeros((L, B, H), jnp.float32)
    c0 = jnp.zeros((L, B, H), jnp.float32)

    def step(carry, x_t):
        h, c = carry
        inp = x_t
        hs, cs = [], []
        for l in range(L):
            w_ih, w_hh, b = layers[l]
            gates = inp @ w_ih.T + h[l] @ w_hh.T + b
            i_g = jax.nn.sigmoid(gates[:, 0 * H : 1 * H])
            f_g = jax.nn.sigmoid(gates[:, 1 * H : 2 * H])
            g_g = jnp.tanh(gates[:, 2 * H : 3 * H])
            o_g = jax.nn.sigmoid(gates[:, 3 * H : 4 * H])
            c_new = f_g * c[l] + i_g * g_g
            h_new = o_g * jnp.tanh(c_new)
            hs.append(h_new)
            cs.append(c_new)
            inp = h_new
        y = jnp.maximum(inp @ params["w_fc"].T + params["b_fc"], 0.0)
        v = y @ params["w_v"].T + params["b_v"]
        return (jnp.stack(hs), jnp.stack(cs)), v

    (_, _), vals = jax.lax.scan(step, (h0, c0), state)
    return vals  # (T, B, 1)


# ------------------------------ parameter init -------------------------------


def init_params(key, state_dim, lstm_dim, linear_dim, num_layers):
    """Deterministic synthetic init (PyTorch-style uniform ±1/sqrt(H))."""
    H = lstm_dim
    bound = 1.0 / np.sqrt(H)
    layers = []
    for l in range(num_layers):
        in_dim = state_dim if l == 0 else H
        key, k1, k2, k3 = jax.random.split(key, 4)
        w_ih = jax.random.uniform(k1, (4 * H, in_dim), jnp.float32, -bound, bound)
        w_hh = jax.random.uniform(k2, (4 * H, H), jnp.float32, -bound, bound)
        # combined bias b_ih + b_hh, kept 2D (1, 4H) for broadcasting in-kernel
        b = jax.random.uniform(k3, (1, 4 * H), jnp.float32, -bound, bound)
        layers.append((w_ih, w_hh, b))
    key, k4, k5, k6, k7 = jax.random.split(key, 5)
    fb = 1.0 / np.sqrt(H)
    vb = 1.0 / np.sqrt(linear_dim)
    params = {
        "layers": layers,
        "w_fc": jax.random.uniform(k4, (linear_dim, H), jnp.float32, -fb, fb),
        "b_fc": jax.random.uniform(k5, (1, linear_dim), jnp.float32, -fb, fb),
        "w_v": jax.random.uniform(k6, (1, linear_dim), jnp.float32, -vb, vb),
        "b_v": jax.random.uniform(k7, (1, 1), jnp.float32, -vb, vb),
    }
    return params


# ----------------------------------- main ------------------------------------

if __name__ == "__main__":
    # small shapes consistent with the module
    T, B = 8, 8            # seq_len, batch
    STATE_DIM = 16
    LSTM_DIM = 32
    LINEAR_DIM = 32
    NUM_LAYERS = 2

    key = jax.random.PRNGKey(0)
    key, kx = jax.random.split(key)
    state = jax.random.normal(kx, (T, B, STATE_DIM), jnp.float32)

    params = init_params(key, STATE_DIM, LSTM_DIM, LINEAR_DIM, NUM_LAYERS)

    values = rnn_value_forward(state, params)
    values = jax.block_until_ready(values)

    ref = jax.block_until_ready(rnn_value_reference(state, params))
    np.testing.assert_allclose(np.asarray(values), np.asarray(ref), rtol=1e-5, atol=1e-5)

    print("KERNEL_OK")
</pallas_src>

<mosaic_0001>
module attributes {stable_mosaic.version = 11 : i64} {
  func.func @kernel(%arg0: i32, %arg1: memref<64x16xf32, #tpu.memory_space<vmem>>, %arg2: memref<16x128xf32, #tpu.memory_space<vmem>>, %arg3: memref<32x128xf32, #tpu.memory_space<vmem>>, %arg4: memref<1x128xf32, #tpu.memory_space<vmem>>, %arg5: memref<32x128xf32, #tpu.memory_space<vmem>>, %arg6: memref<32x128xf32, #tpu.memory_space<vmem>>, %arg7: memref<1x128xf32, #tpu.memory_space<vmem>>, %arg8: memref<32x32xf32, #tpu.memory_space<vmem>>, %arg9: memref<1x32xf32, #tpu.memory_space<vmem>>, %arg10: memref<1x32xf32, #tpu.memory_space<vmem>>, %arg11: memref<1x1xf32, #tpu.memory_space<vmem>>, %arg12: memref<64x1xf32, #tpu.memory_space<vmem>>, %arg13: memref<64x32xf32, #tpu.memory_space<vmem>>, %arg14: memref<64x32xf32, #tpu.memory_space<vmem>>, %arg15: memref<64x128xf32, #tpu.memory_space<vmem>>) attributes {dimension_semantics = [#tpu.dimension_semantics<arbitrary>], iteration_bounds = array<i64: 1>, scalar_prefetch = 0 : i64, scratch_operands = 3 : i64, tpu.core_type = #tpu.core_type<tc>, window_params = [{pipeline_mode = #tpu.pipeline_mode<synchronous>, transform_indices = @transform_0, window_bounds = array<i64: 64, 16>}, {pipeline_mode = #tpu.pipeline_mode<synchronous>, transform_indices = @transform_1, window_bounds = array<i64: 16, 128>}, {pipeline_mode = #tpu.pipeline_mode<synchronous>, transform_indices = @transform_2, window_bounds = array<i64: 32, 128>}, {pipeline_mode = #tpu.pipeline_mode<synchronous>, transform_indices = @transform_3, window_bounds = array<i64: 1, 128>}, {pipeline_mode = #tpu.pipeline_mode<synchronous>, transform_indices = @transform_4, window_bounds = array<i64: 32, 128>}, {pipeline_mode = #tpu.pipeline_mode<synchronous>, transform_indices = @transform_5, window_bounds = array<i64: 32, 128>}, {pipeline_mode = #tpu.pipeline_mode<synchronous>, transform_indices = @transform_6, window_bounds = array<i64: 1, 128>}, {pipeline_mode = #tpu.pipeline_mode<synchronous>, transform_indices = @transform_7, window_bounds = array<i64: 32, 32>}, {pipeline_mode = #tpu.pipeline_mode<synchronous>, transform_indices = @transform_8, window_bounds = array<i64: 1, 32>}, {pipeline_mode = #tpu.pipeline_mode<synchronous>, transform_indices = @transform_9, window_bounds = array<i64: 1, 32>}, {pipeline_mode = #tpu.pipeline_mode<synchronous>, transform_indices = @transform_10, window_bounds = array<i64: 1, 1>}, {pipeline_mode = #tpu.pipeline_mode<synchronous>, transform_indices = @transform_11, window_bounds = array<i64: 64, 1>}]} {
    %c0 = arith.constant 0 : index
    %c0_0 = arith.constant 0 : index
    %0 = vector.load %arg1[%c0, %c0_0] : memref<64x16xf32, #tpu.memory_space<vmem>>, vector<64x16xf32>
    %c0_1 = arith.constant 0 : index
    %c0_2 = arith.constant 0 : index
    %1 = vector.load %arg2[%c0_1, %c0_2] : memref<16x128xf32, #tpu.memory_space<vmem>>, vector<16x128xf32>
    %cst = arith.constant dense<0.000000e+00> : vector<64x128xf32>
    %2 = tpu.matmul %0, %1, %cst {dimension_numbers = #tpu.dot_dimension_numbers<[1], [0], [0], [1], [0, 0, 1, 1], [], []>} : vector<64x16xf32>, vector<16x128xf32>, vector<64x128xf32> -> vector<64x128xf32>
    %c0_3 = arith.constant 0 : index
    %c0_4 = arith.constant 0 : index
    %3 = vector.load %arg4[%c0_3, %c0_4] : memref<1x128xf32, #tpu.memory_space<vmem>>, vector<1x128xf32>
    %4 = vector.broadcast %3 : vector<1x128xf32> to vector<64x128xf32>
    %5 = arith.addf %2, %4 : vector<64x128xf32>
    %c0_5 = arith.constant 0 : index
    %c0_6 = arith.constant 0 : index
    %6 = vector.load %arg15[%c0_5, %c0_6] : memref<64x128xf32, #tpu.memory_space<vmem>>, vector<64x128xf32>
    tpu.vector_store %arg15[%c0_5, %c0_6], %5 {strides = array<i32>} : memref<64x128xf32, #tpu.memory_space<vmem>>, vector<64x128xf32>,
    %c0_7 = arith.constant 0 : index
    %c0_8 = arith.constant 0 : index
    %7 = vector.load %arg3[%c0_7, %c0_8] : memref<32x128xf32, #tpu.memory_space<vmem>>, vector<32x128xf32>
    %cst_9 = arith.constant 0.000000e+00 : f32
    %8 = vector.broadcast %cst_9 : f32 to vector<8x32xf32>
    %cst_10 = arith.constant 0.000000e+00 : f32
    %9 = vector.broadcast %cst_10 : f32 to vector<8x32xf32>
    %c0_11 = arith.constant 0 : index
    %c0_12 = arith.constant 0 : index
    %10 = vector.load %arg15[%c0_11, %c0_12] : memref<64x128xf32, #tpu.memory_space<vmem>>, vector<8x128xf32>
    %cst_13 = arith.constant dense<0.000000e+00> : vector<8x128xf32>
    %11 = tpu.matmul %8, %7, %cst_13 {dimension_numbers = #tpu.dot_dimension_numbers<[1], [0], [0], [1], [0, 0, 1, 1], [], []>} : vector<8x32xf32>, vector<32x128xf32>, vector<8x128xf32> -> vector<8x128xf32>
    %12 = arith.addf %10, %11 : vector<8x128xf32>
    %13 = arith.negf %12 : vector<8x128xf32>
    %14 = math.exp %13 : vector<8x128xf32>
    %cst_14 = arith.constant 1.000000e+00 : f32
    %15 = vector.broadcast %cst_14 : f32 to vector<8x128xf32>
    %16 = arith.addf %15, %14 : vector<8x128xf32>
    %17 = arith.divf %15, %16 : vector<8x128xf32>
    %18 = vector.extract_strided_slice %17 {offsets = [0, 0], sizes = [8, 32], strides = [1, 1]} : vector<8x128xf32> to vector<8x32xf32>
    %19 = vector.extract_strided_slice %17 {offsets = [0, 32], sizes = [8, 32], strides = [1, 1]} : vector<8x128xf32> to vector<8x32xf32>
    %20 = vector.extract_strided_slice %17 {offsets = [0, 64], sizes = [8, 32], strides = [1, 1]} : vector<8x128xf32> to vector<8x32xf32>
    %cst_15 = arith.constant 2.000000e+00 : f32
    %21 = vector.broadcast %cst_15 : f32 to vector<8x32xf32>
    %22 = arith.mulf %21, %20 : vector<8x32xf32>
    %cst_16 = arith.constant 1.000000e+00 : f32
    %23 = vector.broadcast %cst_16 : f32 to vector<8x32xf32>
    %24 = arith.subf %22, %23 : vector<8x32xf32>
    %25 = vector.extract_strided_slice %17 {offsets = [0, 96], sizes = [8, 32], strides = [1, 1]} : vector<8x128xf32> to vector<8x32xf32>
    %26 = arith.mulf %19, %9 : vector<8x32xf32>
    %27 = arith.mulf %18, %24 : vector<8x32xf32>
    %28 = arith.addf %26, %27 : vector<8x32xf32>
    %29 = math.tanh %28 : vector<8x32xf32>
    %30 = arith.mulf %25, %29 : vector<8x32xf32>
    %c0_17 = arith.constant 0 : index
    %c0_18 = arith.constant 0 : index
    %31 = vector.load %arg13[%c0_17, %c0_18] : memref<64x32xf32, #tpu.memory_space<vmem>>, vector<8x32xf32>
    tpu.vector_store %arg13[%c0_17, %c0_18], %30 {strides = array<i32>} : memref<64x32xf32, #tpu.memory_space<vmem>>, vector<8x32xf32>,
    %c8 = arith.constant 8 : index
    %c0_19 = arith.constant 0 : index
    %32 = vector.load %arg15[%c8, %c0_19] : memref<64x128xf32, #tpu.memory_space<vmem>>, vector<8x128xf32>
    %cst_20 = arith.constant dense<0.000000e+00> : vector<8x128xf32>
    %33 = tpu.matmul %30, %7, %cst_20 {dimension_numbers = #tpu.dot_dimension_numbers<[1], [0], [0], [1], [0, 0, 1, 1], [], []>} : vector<8x32xf32>, vector<32x128xf32>, vector<8x128xf32> -> vector<8x128xf32>
    %34 = arith.addf %32, %33 : vector<8x128xf32>
    %35 = arith.negf %34 : vector<8x128xf32>
    %36 = math.exp %35 : vector<8x128xf32>
    %cst_21 = arith.constant 1.000000e+00 : f32
    %37 = vector.broadcast %cst_21 : f32 to vector<8x128xf32>
    %38 = arith.addf %37, %36 : vector<8x128xf32>
    %39 = arith.divf %37, %38 : vector<8x128xf32>
    %40 = vector.extract_strided_slice %39 {offsets = [0, 0], sizes = [8, 32], strides = [1, 1]} : vector<8x128xf32> to vector<8x32xf32>
    %41 = vector.extract_strided_slice %39 {offsets = [0, 32], sizes = [8, 32], strides = [1, 1]} : vector<8x128xf32> to vector<8x32xf32>
    %42 = vector.extract_strided_slice %39 {offsets = [0, 64], sizes = [8, 32], strides = [1, 1]} : vector<8x128xf32> to vector<8x32xf32>
    %cst_22 = arith.constant 2.000000e+00 : f32
    %43 = vector.broadcast %cst_22 : f32 to vector<8x32xf32>
    %44 = arith.mulf %43, %42 : vector<8x32xf32>
    %cst_23 = arith.constant 1.000000e+00 : f32
    %45 = vector.broadcast %cst_23 : f32 to vector<8x32xf32>
    %46 = arith.subf %44, %45 : vector<8x32xf32>
    %47 = vector.extract_strided_slice %39 {offsets = [0, 96], sizes = [8, 32], strides = [1, 1]} : vector<8x128xf32> to vector<8x32xf32>
    %48 = arith.mulf %41, %28 : vector<8x32xf32>
    %49 = arith.mulf %40, %46 : vector<8x32xf32>
    %50 = arith.addf %48, %49 : vector<8x32xf32>
    %51 = math.tanh %50 : vector<8x32xf32>
    %52 = arith.mulf %47, %51 : vector<8x32xf32>
    %c8_24 = arith.constant 8 : index
    %c0_25 = arith.constant 0 : index
    %53 = vector.load %arg13[%c8_24, %c0_25] : memref<64x32xf32, #tpu.memory_space<vmem>>, vector<8x32xf32>
    tpu.vector_store %arg13[%c8_24, %c0_25], %52 {strides = array<i32>} : memref<64x32xf32, #tpu.memory_space<vmem>>, vector<8x32xf32>,
    %c16 = arith.constant 16 : index
    %c0_26 = arith.constant 0 : index
    %54 = vector.load %arg15[%c16, %c0_26] : memref<64x128xf32, #tpu.memory_space<vmem>>, vector<8x128xf32>
    %cst_27 = arith.constant dense<0.000000e+00> : vector<8x128xf32>
    %55 = tpu.matmul %52, %7, %cst_27 {dimension_numbers = #tpu.dot_dimension_numbers<[1], [0], [0], [1], [0, 0, 1, 1], [], []>} : vector<8x32xf32>, vector<32x128xf32>, vector<8x128xf32> -> vector<8x128xf32>
    %56 = arith.addf %54, %55 : vector<8x128xf32>
    %57 = arith.negf %56 : vector<8x128xf32>
    %58 = math.exp %57 : vector<8x128xf32>
    %cst_28 = arith.constant 1.000000e+00 : f32
    %59 = vector.broadcast %cst_28 : f32 to vector<8x128xf32>
    %60 = arith.addf %59, %58 : vector<8x128xf32>
    %61 = arith.divf %59, %60 : vector<8x128xf32>
    %62 = vector.extract_strided_slice %61 {offsets = [0, 0], sizes = [8, 32], strides = [1, 1]} : vector<8x128xf32> to vector<8x32xf32>
    %63 = vector.extract_strided_slice %61 {offsets = [0, 32], sizes = [8, 32], strides = [1, 1]} : vector<8x128xf32> to vector<8x32xf32>
    %64 = vector.extract_strided_slice %61 {offsets = [0, 64], sizes = [8, 32], strides = [1, 1]} : vector<8x128xf32> to vector<8x32xf32>
    %cst_29 = arith.constant 2.000000e+00 : f32
    %65 = vector.broadcast %cst_29 : f32 to vector<8x32xf32>
    %66 = arith.mulf %65, %64 : vector<8x32xf32>
    %cst_30 = arith.constant 1.000000e+00 : f32
    %67 = vector.broadcast %cst_30 : f32 to vector<8x32xf32>
    %68 = arith.subf %66, %67 : vector<8x32xf32>
    %69 = vector.extract_strided_slice %61 {offsets = [0, 96], sizes = [8, 32], strides = [1, 1]} : vector<8x128xf32> to vector<8x32xf32>
    %70 = arith.mulf %63, %50 : vector<8x32xf32>
    %71 = arith.mulf %62, %68 : vector<8x32xf32>
    %72 = arith.addf %70, %71 : vector<8x32xf32>
    %73 = math.tanh %72 : vector<8x32xf32>
    %74 = arith.mulf %69, %73 : vector<8x32xf32>
    %c16_31 = arith.constant 16 : index
    %c0_32 = arith.constant 0 : index
    %75 = vector.load %arg13[%c16_31, %c0_32] : memref<64x32xf32, #tpu.memory_space<vmem>>, vector<8x32xf32>
    tpu.vector_store %arg13[%c16_31, %c0_32], %74 {strides = array<i32>} : memref<64x32xf32, #tpu.memory_space<vmem>>, vector<8x32xf32>,
    %c24 = arith.constant 24 : index
    %c0_33 = arith.constant 0 : index
    %76 = vector.load %arg15[%c24, %c0_33] : memref<64x128xf32, #tpu.memory_space<vmem>>, vector<8x128xf32>
    %cst_34 = arith.constant dense<0.000000e+00> : vector<8x128xf32>
    %77 = tpu.matmul %74, %7, %cst_34 {dimension_numbers = #tpu.dot_dimension_numbers<[1], [0], [0], [1], [0, 0, 1, 1], [], []>} : vector<8x32xf32>, vector<32x128xf32>, vector<8x128xf32> -> vector<8x128xf32>
    %78 = arith.addf %76, %77 : vector<8x128xf32>
    %79 = arith.negf %78 : vector<8x128xf32>
    %80 = math.exp %79 : vector<8x128xf32>
    %cst_35 = arith.constant 1.000000e+00 : f32
    %81 = vector.broadcast %cst_35 : f32 to vector<8x128xf32>
    %82 = arith.addf %81, %80 : vector<8x128xf32>
    %83 = arith.divf %81, %82 : vector<8x128xf32>
    %84 = vector.extract_strided_slice %83 {offsets = [0, 0], sizes = [8, 32], strides = [1, 1]} : vector<8x128xf32> to vector<8x32xf32>
    %85 = vector.extract_strided_slice %83 {offsets = [0, 32], sizes = [8, 32], strides = [1, 1]} : vector<8x128xf32> to vector<8x32xf32>
    %86 = vector.extract_strided_slice %83 {offsets = [0, 64], sizes = [8, 32], strides = [1, 1]} : vector<8x128xf32> to vector<8x32xf32>
    %cst_36 = arith.constant 2.000000e+00 : f32
    %87 = vector.broadcast %cst_36 : f32 to vector<8x32xf32>
    %88 = arith.mulf %87, %86 : vector<8x32xf32>
    %cst_37 = arith.constant 1.000000e+00 : f32
    %89 = vector.broadcast %cst_37 : f32 to vector<8x32xf32>
    %90 = arith.subf %88, %89 : vector<8x32xf32>
    %91 = vector.extract_strided_slice %83 {offsets = [0, 96], sizes = [8, 32], strides = [1, 1]} : vector<8x128xf32> to vector<8x32xf32>
    %92 = arith.mulf %85, %72 : vector<8x32xf32>
    %93 = arith.mulf %84, %90 : vector<8x32xf32>
    %94 = arith.addf %92, %93 : vector<8x32xf32>
    %95 = math.tanh %94 : vector<8x32xf32>
    %96 = arith.mulf %91, %95 : vector<8x32xf32>
    %c24_38 = arith.constant 24 : index
    %c0_39 = arith.constant 0 : index
    %97 = vector.load %arg13[%c24_38, %c0_39] : memref<64x32xf32, #tpu.memory_space<vmem>>, vector<8x32xf32>
    tpu.vector_store %arg13[%c24_38, %c0_39], %96 {strides = array<i32>} : memref<64x32xf32, #tpu.memory_space<vmem>>, vector<8x32xf32>,
    %c32 = arith.constant 32 : index
    %c0_40 = arith.constant 0 : index
    %98 = vector.load %arg15[%c32, %c0_40] : memref<64x128xf32, #tpu.memory_space<vmem>>, vector<8x128xf32>
    %cst_41 = arith.constant dense<0.000000e+00> : vector<8x128xf32>
    %99 = tpu.matmul %96, %7, %cst_41 {dimension_numbers = #tpu.dot_dimension_numbers<[1], [0], [0], [1], [0, 0, 1, 1], [], []>} : vector<8x32xf32>, vector<32x128xf32>, vector<8x128xf32> -> vector<8x128xf32>
    %100 = arith.addf %98, %99 : vector<8x128xf32>
    %101 = arith.negf %100 : vector<8x128xf32>
    %102 = math.exp %101 : vector<8x128xf32>
    %cst_42 = arith.constant 1.000000e+00 : f32
    %103 = vector.broadcast %cst_42 : f32 to vector<8x128xf32>
    %104 = arith.addf %103, %102 : vector<8x128xf32>
    %105 = arith.divf %103, %104 : vector<8x128xf32>
    %106 = vector.extract_strided_slice %105 {offsets = [0, 0], sizes = [8, 32], strides = [1, 1]} : vector<8x128xf32> to vector<8x32xf32>
    %107 = vector.extract_strided_slice %105 {offsets = [0, 32], sizes = [8, 32], strides = [1, 1]} : vector<8x128xf32> to vector<8x32xf32>
    %108 = vector.extract_strided_slice %105 {offsets = [0, 64], sizes = [8, 32], strides = [1, 1]} : vector<8x128xf32> to vector<8x32xf32>
    %cst_43 = arith.constant 2.000000e+00 : f32
    %109 = vector.broadcast %cst_43 : f32 to vector<8x32xf32>
    %110 = arith.mulf %109, %108 : vector<8x32xf32>
    %cst_44 = arith.constant 1.000000e+00 : f32
    %111 = vector.broadcast %cst_44 : f32 to vector<8x32xf32>
    %112 = arith.subf %110, %111 : vector<8x32xf32>
    %113 = vector.extract_strided_slice %105 {offsets = [0, 96], sizes = [8, 32], strides = [1, 1]} : vector<8x128xf32> to vector<8x32xf32>
    %114 = arith.mulf %107, %94 : vector<8x32xf32>
    %115 = arith.mulf %106, %112 : vector<8x32xf32>
    %116 = arith.addf %114, %115 : vector<8x32xf32>
    %117 = math.tanh %116 : vector<8x32xf32>
    %118 = arith.mulf %113, %117 : vector<8x32xf32>
    %c32_45 = arith.constant 32 : index
    %c0_46 = arith.constant 0 : index
    %119 = vector.load %arg13[%c32_45, %c0_46] : memref<64x32xf32, #tpu.memory_space<vmem>>, vector<8x32xf32>
    tpu.vector_store %arg13[%c32_45, %c0_46], %118 {strides = array<i32>} : memref<64x32xf32, #tpu.memory_space<vmem>>, vector<8x32xf32>,
    %c40 = arith.constant 40 : index
    %c0_47 = arith.constant 0 : index
    %120 = vector.load %arg15[%c40, %c0_47] : memref<64x128xf32, #tpu.memory_space<vmem>>, vector<8x128xf32>
    %cst_48 = arith.constant dense<0.000000e+00> : vector<8x128xf32>
    %121 = tpu.matmul %118, %7, %cst_48 {dimension_numbers = #tpu.dot_dimension_numbers<[1], [0], [0], [1], [0, 0, 1, 1], [], []>} : vector<8x32xf32>, vector<32x128xf32>, vector<8x128xf32> -> vector<8x128xf32>
    %122 = arith.addf %120, %121 : vector<8x128xf32>
    %123 = arith.negf %122 : vector<8x128xf32>
    %124 = math.exp %123 : vector<8x128xf32>
    %cst_49 = arith.constant 1.000000e+00 : f32
    %125 = vector.broadcast %cst_49 : f32 to vector<8x128xf32>
    %126 = arith.addf %125, %124 : vector<8x128xf32>
    %127 = arith.divf %125, %126 : vector<8x128xf32>
    %128 = vector.extract_strided_slice %127 {offsets = [0, 0], sizes = [8, 32], strides = [1, 1]} : vector<8x128xf32> to vector<8x32xf32>
    %129 = vector.extract_strided_slice %127 {offsets = [0, 32], sizes = [8, 32], strides = [1, 1]} : vector<8x128xf32> to vector<8x32xf32>
    %130 = vector.extract_strided_slice %127 {offsets = [0, 64], sizes = [8, 32], strides = [1, 1]} : vector<8x128xf32> to vector<8x32xf32>
    %cst_50 = arith.constant 2.000000e+00 : f32
    %131 = vector.broadcast %cst_50 : f32 to vector<8x32xf32>
    %132 = arith.mulf %131, %130 : vector<8x32xf32>
    %cst_51 = arith.constant 1.000000e+00 : f32
    %133 = vector.broadcast %cst_51 : f32 to vector<8x32xf32>
    %134 = arith.subf %132, %133 : vector<8x32xf32>
    %135 = vector.extract_strided_slice %127 {offsets = [0, 96], sizes = [8, 32], strides = [1, 1]} : vector<8x128xf32> to vector<8x32xf32>
    %136 = arith.mulf %129, %116 : vector<8x32xf32>
    %137 = arith.mulf %128, %134 : vector<8x32xf32>
    %138 = arith.addf %136, %137 : vector<8x32xf32>
    %139 = math.tanh %138 : vector<8x32xf32>
    %140 = arith.mulf %135, %139 : vector<8x32xf32>
    %c40_52 = arith.constant 40 : index
    %c0_53 = arith.constant 0 : index
    %141 = vector.load %arg13[%c40_52, %c0_53] : memref<64x32xf32, #tpu.memory_space<vmem>>, vector<8x32xf32>
    tpu.vector_store %arg13[%c40_52, %c0_53], %140 {strides = array<i32>} : memref<64x32xf32, #tpu.memory_space<vmem>>, vector<8x32xf32>,
    %c48 = arith.constant 48 : index
    %c0_54 = arith.constant 0 : index
    %142 = vector.load %arg15[%c48, %c0_54] : memref<64x128xf32, #tpu.memory_space<vmem>>, vector<8x128xf32>
    %cst_55 = arith.constant dense<0.000000e+00> : vector<8x128xf32>
    %143 = tpu.matmul %140, %7, %cst_55 {dimension_numbers = #tpu.dot_dimension_numbers<[1], [0], [0], [1], [0, 0, 1, 1], [], []>} : vector<8x32xf32>, vector<32x128xf32>, vector<8x128xf32> -> vector<8x128xf32>
    %144 = arith.addf %142, %143 : vector<8x128xf32>
    %145 = arith.negf %144 : vector<8x128xf32>
    %146 = math.exp %145 : vector<8x128xf32>
    %cst_56 = arith.constant 1.000000e+00 : f32
    %147 = vector.broadcast %cst_56 : f32 to vector<8x128xf32>
    %148 = arith.addf %147, %146 : vector<8x128xf32>
    %149 = arith.divf %147, %148 : vector<8x128xf32>
    %150 = vector.extract_strided_slice %149 {offsets = [0, 0], sizes = [8, 32], strides = [1, 1]} : vector<8x128xf32> to vector<8x32xf32>
    %151 = vector.extract_strided_slice %149 {offsets = [0, 32], sizes = [8, 32], strides = [1, 1]} : vector<8x128xf32> to vector<8x32xf32>
    %152 = vector.extract_strided_slice %149 {offsets = [0, 64], sizes = [8, 32], strides = [1, 1]} : vector<8x128xf32> to vector<8x32xf32>
    %cst_57 = arith.constant 2.000000e+00 : f32
    %153 = vector.broadcast %cst_57 : f32 to vector<8x32xf32>
    %154 = arith.mulf %153, %152 : vector<8x32xf32>
    %cst_58 = arith.constant 1.000000e+00 : f32
    %155 = vector.broadcast %cst_58 : f32 to vector<8x32xf32>
    %156 = arith.subf %154, %155 : vector<8x32xf32>
    %157 = vector.extract_strided_slice %149 {offsets = [0, 96], sizes = [8, 32], strides = [1, 1]} : vector<8x128xf32> to vector<8x32xf32>
    %158 = arith.mulf %151, %138 : vector<8x32xf32>
    %159 = arith.mulf %150, %156 : vector<8x32xf32>
    %160 = arith.addf %158, %159 : vector<8x32xf32>
    %161 = math.tanh %160 : vector<8x32xf32>
    %162 = arith.mulf %157, %161 : vector<8x32xf32>
    %c48_59 = arith.constant 48 : index
    %c0_60 = arith.constant 0 : index
    %163 = vector.load %arg13[%c48_59, %c0_60] : memref<64x32xf32, #tpu.memory_space<vmem>>, vector<8x32xf32>
    tpu.vector_store %arg13[%c48_59, %c0_60], %162 {strides = array<i32>} : memref<64x32xf32, #tpu.memory_space<vmem>>, vector<8x32xf32>,
    %c56 = arith.constant 56 : index
    %c0_61 = arith.constant 0 : index
    %164 = vector.load %arg15[%c56, %c0_61] : memref<64x128xf32, #tpu.memory_space<vmem>>, vector<8x128xf32>
    %cst_62 = arith.constant dense<0.000000e+00> : vector<8x128xf32>
    %165 = tpu.matmul %162, %7, %cst_62 {dimension_numbers = #tpu.dot_dimension_numbers<[1], [0], [0], [1], [0, 0, 1, 1], [], []>} : vector<8x32xf32>, vector<32x128xf32>, vector<8x128xf32> -> vector<8x128xf32>
    %166 = arith.addf %164, %165 : vector<8x128xf32>
    %167 = arith.negf %166 : vector<8x128xf32>
    %168 = math.exp %167 : vector<8x128xf32>
    %cst_63 = arith.constant 1.000000e+00 : f32
    %169 = vector.broadcast %cst_63 : f32 to vector<8x128xf32>
    %170 = arith.addf %169, %168 : vector<8x128xf32>
    %171 = arith.divf %169, %170 : vector<8x128xf32>
    %172 = vector.extract_strided_slice %171 {offsets = [0, 0], sizes = [8, 32], strides = [1, 1]} : vector<8x128xf32> to vector<8x32xf32>
    %173 = vector.extract_strided_slice %171 {offsets = [0, 32], sizes = [8, 32], strides = [1, 1]} : vector<8x128xf32> to vector<8x32xf32>
    %174 = vector.extract_strided_slice %171 {offsets = [0, 64], sizes = [8, 32], strides = [1, 1]} : vector<8x128xf32> to vector<8x32xf32>
    %cst_64 = arith.constant 2.000000e+00 : f32
    %175 = vector.broadcast %cst_64 : f32 to vector<8x32xf32>
    %176 = arith.mulf %175, %174 : vector<8x32xf32>
    %cst_65 = arith.constant 1.000000e+00 : f32
    %177 = vector.broadcast %cst_65 : f32 to vector<8x32xf32>
    %178 = arith.subf %176, %177 : vector<8x32xf32>
    %179 = vector.extract_strided_slice %171 {offsets = [0, 96], sizes = [8, 32], strides = [1, 1]} : vector<8x128xf32> to vector<8x32xf32>
    %180 = arith.mulf %173, %160 : vector<8x32xf32>
    %181 = arith.mulf %172, %178 : vector<8x32xf32>
    %182 = arith.addf %180, %181 : vector<8x32xf32>
    %183 = math.tanh %182 : vector<8x32xf32>
    %184 = arith.mulf %179, %183 : vector<8x32xf32>
    %c56_66 = arith.constant 56 : index
    %c0_67 = arith.constant 0 : index
    %185 = vector.load %arg13[%c56_66, %c0_67] : memref<64x32xf32, #tpu.memory_space<vmem>>, vector<8x32xf32>
    tpu.vector_store %arg13[%c56_66, %c0_67], %184 {strides = array<i32>} : memref<64x32xf32, #tpu.memory_space<vmem>>, vector<8x32xf32>,
    %c0_68 = arith.constant 0 : index
    %c0_69 = arith.constant 0 : index
    %186 = vector.load %arg13[%c0_68, %c0_69] : memref<64x32xf32, #tpu.memory_space<vmem>>, vector<64x32xf32>
    %c0_70 = arith.constant 0 : index
    %c0_71 = arith.constant 0 : index
    %187 = vector.load %arg5[%c0_70, %c0_71] : memref<32x128xf32, #tpu.memory_space<vmem>>, vector<32x128xf32>
    %cst_72 = arith.constant dense<0.000000e+00> : vector<64x128xf32>
    %188 = tpu.matmul %186, %187, %cst_72 {dimension_numbers = #tpu.dot_dimension_numbers<[1], [0], [0], [1], [0, 0, 1, 1], [], []>} : vector<64x32xf32>, vector<32x128xf32>, vector<64x128xf32> -> vector<64x128xf32>
    %c0_73 = arith.constant 0 : index
    %c0_74 = arith.constant 0 : index
    %189 = vector.load %arg7[%c0_73, %c0_74] : memref<1x128xf32, #tpu.memory_space<vmem>>, vector<1x128xf32>
    %190 = vector.broadcast %189 : vector<1x128xf32> to vector<64x128xf32>
    %191 = arith.addf %188, %190 : vector<64x128xf32>
    %c0_75 = arith.constant 0 : index
    %c0_76 = arith.constant 0 : index
    %192 = vector.load %arg15[%c0_75, %c0_76] : memref<64x128xf32, #tpu.memory_space<vmem>>, vector<64x128xf32>
    tpu.vector_store %arg15[%c0_75, %c0_76], %191 {strides = array<i32>} : memref<64x128xf32, #tpu.memory_space<vmem>>, vector<64x128xf32>,
    %c0_77 = arith.constant 0 : index
    %c0_78 = arith.constant 0 : index
    %193 = vector.load %arg6[%c0_77, %c0_78] : memref<32x128xf32, #tpu.memory_space<vmem>>, vector<32x128xf32>
    %cst_79 = arith.constant 0.000000e+00 : f32
    %194 = vector.broadcast %cst_79 : f32 to vector<8x32xf32>
    %cst_80 = arith.constant 0.000000e+00 : f32
    %195 = vector.broadcast %cst_80 : f32 to vector<8x32xf32>
    %c0_81 = arith.constant 0 : index
    %c0_82 = arith.constant 0 : index
    %196 = vector.load %arg15[%c0_81, %c0_82] : memref<64x128xf32, #tpu.memory_space<vmem>>, vector<8x128xf32>
    %cst_83 = arith.constant dense<0.000000e+00> : vector<8x128xf32>
    %197 = tpu.matmul %194, %193, %cst_83 {dimension_numbers = #tpu.dot_dimension_numbers<[1], [0], [0], [1], [0, 0, 1, 1], [], []>} : vector<8x32xf32>, vector<32x128xf32>, vector<8x128xf32> -> vector<8x128xf32>
    %198 = arith.addf %196, %197 : vector<8x128xf32>
    %199 = arith.negf %198 : vector<8x128xf32>
    %200 = math.exp %199 : vector<8x128xf32>
    %cst_84 = arith.constant 1.000000e+00 : f32
    %201 = vector.broadcast %cst_84 : f32 to vector<8x128xf32>
    %202 = arith.addf %201, %200 : vector<8x128xf32>
    %203 = arith.divf %201, %202 : vector<8x128xf32>
    %204 = vector.extract_strided_slice %203 {offsets = [0, 0], sizes = [8, 32], strides = [1, 1]} : vector<8x128xf32> to vector<8x32xf32>
    %205 = vector.extract_strided_slice %203 {offsets = [0, 32], sizes = [8, 32], strides = [1, 1]} : vector<8x128xf32> to vector<8x32xf32>
    %206 = vector.extract_strided_slice %203 {offsets = [0, 64], sizes = [8, 32], strides = [1, 1]} : vector<8x128xf32> to vector<8x32xf32>
    %cst_85 = arith.constant 2.000000e+00 : f32
    %207 = vector.broadcast %cst_85 : f32 to vector<8x32xf32>
    %208 = arith.mulf %207, %206 : vector<8x32xf32>
    %cst_86 = arith.constant 1.000000e+00 : f32
    %209 = vector.broadcast %cst_86 : f32 to vector<8x32xf32>
    %210 = arith.subf %208, %209 : vector<8x32xf32>
    %211 = vector.extract_strided_slice %203 {offsets = [0, 96], sizes = [8, 32], strides = [1, 1]} : vector<8x128xf32> to vector<8x32xf32>
    %212 = arith.mulf %205, %195 : vector<8x32xf32>
    %213 = arith.mulf %204, %210 : vector<8x32xf32>
    %214 = arith.addf %212, %213 : vector<8x32xf32>
    %215 = math.tanh %214 : vector<8x32xf32>
    %216 = arith.mulf %211, %215 : vector<8x32xf32>
    %c0_87 = arith.constant 0 : index
    %c0_88 = arith.constant 0 : index
    %217 = vector.load %arg14[%c0_87, %c0_88] : memref<64x32xf32, #tpu.memory_space<vmem>>, vector<8x32xf32>
    tpu.vector_store %arg14[%c0_87, %c0_88], %216 {strides = array<i32>} : memref<64x32xf32, #tpu.memory_space<vmem>>, vector<8x32xf32>,
    %c8_89 = arith.constant 8 : index
    %c0_90 = arith.constant 0 : index
    %218 = vector.load %arg15[%c8_89, %c0_90] : memref<64x128xf32, #tpu.memory_space<vmem>>, vector<8x128xf32>
    %cst_91 = arith.constant dense<0.000000e+00> : vector<8x128xf32>
    %219 = tpu.matmul %216, %193, %cst_91 {dimension_numbers = #tpu.dot_dimension_numbers<[1], [0], [0], [1], [0, 0, 1, 1], [], []>} : vector<8x32xf32>, vector<32x128xf32>, vector<8x128xf32> -> vector<8x128xf32>
    %220 = arith.addf %218, %219 : vector<8x128xf32>
    %221 = arith.negf %220 : vector<8x128xf32>
    %222 = math.exp %221 : vector<8x128xf32>
    %cst_92 = arith.constant 1.000000e+00 : f32
    %223 = vector.broadcast %cst_92 : f32 to vector<8x128xf32>
    %224 = arith.addf %223, %222 : vector<8x128xf32>
    %225 = arith.divf %223, %224 : vector<8x128xf32>
    %226 = vector.extract_strided_slice %225 {offsets = [0, 0], sizes = [8, 32], strides = [1, 1]} : vector<8x128xf32> to vector<8x32xf32>
    %227 = vector.extract_strided_slice %225 {offsets = [0, 32], sizes = [8, 32], strides = [1, 1]} : vector<8x128xf32> to vector<8x32xf32>
    %228 = vector.extract_strided_slice %225 {offsets = [0, 64], sizes = [8, 32], strides = [1, 1]} : vector<8x128xf32> to vector<8x32xf32>
    %cst_93 = arith.constant 2.000000e+00 : f32
    %229 = vector.broadcast %cst_93 : f32 to vector<8x32xf32>
    %230 = arith.mulf %229, %228 : vector<8x32xf32>
    %cst_94 = arith.constant 1.000000e+00 : f32
    %231 = vector.broadcast %cst_94 : f32 to vector<8x32xf32>
    %232 = arith.subf %230, %231 : vector<8x32xf32>
    %233 = vector.extract_strided_slice %225 {offsets = [0, 96], sizes = [8, 32], strides = [1, 1]} : vector<8x128xf32> to vector<8x32xf32>
    %234 = arith.mulf %227, %214 : vector<8x32xf32>
    %235 = arith.mulf %226, %232 : vector<8x32xf32>
    %236 = arith.addf %234, %235 : vector<8x32xf32>
    %237 = math.tanh %236 : vector<8x32xf32>
    %238 = arith.mulf %233, %237 : vector<8x32xf32>
    %c8_95 = arith.constant 8 : index
    %c0_96 = arith.constant 0 : index
    %239 = vector.load %arg14[%c8_95, %c0_96] : memref<64x32xf32, #tpu.memory_space<vmem>>, vector<8x32xf32>
    tpu.vector_store %arg14[%c8_95, %c0_96], %238 {strides = array<i32>} : memref<64x32xf32, #tpu.memory_space<vmem>>, vector<8x32xf32>,
    %c16_97 = arith.constant 16 : index
    %c0_98 = arith.constant 0 : index
    %240 = vector.load %arg15[%c16_97, %c0_98] : memref<64x128xf32, #tpu.memory_space<vmem>>, vector<8x128xf32>
    %cst_99 = arith.constant dense<0.000000e+00> : vector<8x128xf32>
    %241 = tpu.matmul %238, %193, %cst_99 {dimension_numbers = #tpu.dot_dimension_numbers<[1], [0], [0], [1], [0, 0, 1, 1], [], []>} : vector<8x32xf32>, vector<32x128xf32>, vector<8x128xf32> -> vector<8x128xf32>
    %242 = arith.addf %240, %241 : vector<8x128xf32>
    %243 = arith.negf %242 : vector<8x128xf32>
    %244 = math.exp %243 : vector<8x128xf32>
    %cst_100 = arith.constant 1.000000e+00 : f32
    %245 = vector.broadcast %cst_100 : f32 to vector<8x128xf32>
    %246 = arith.addf %245, %244 : vector<8x128xf32>
    %247 = arith.divf %245, %246 : vector<8x128xf32>
    %248 = vector.extract_strided_slice %247 {offsets = [0, 0], sizes = [8, 32], strides = [1, 1]} : vector<8x128xf32> to vector<8x32xf32>
    %249 = vector.extract_strided_slice %247 {offsets = [0, 32], sizes = [8, 32], strides = [1, 1]} : vector<8x128xf32> to vector<8x32xf32>
    %250 = vector.extract_strided_slice %247 {offsets = [0, 64], sizes = [8, 32], strides = [1, 1]} : vector<8x128xf32> to vector<8x32xf32>
    %cst_101 = arith.constant 2.000000e+00 : f32
    %251 = vector.broadcast %cst_101 : f32 to vector<8x32xf32>
    %252 = arith.mulf %251, %250 : vector<8x32xf32>
    %cst_102 = arith.constant 1.000000e+00 : f32
    %253 = vector.broadcast %cst_102 : f32 to vector<8x32xf32>
    %254 = arith.subf %252, %253 : vector<8x32xf32>
    %255 = vector.extract_strided_slice %247 {offsets = [0, 96], sizes = [8, 32], strides = [1, 1]} : vector<8x128xf32> to vector<8x32xf32>
    %256 = arith.mulf %249, %236 : vector<8x32xf32>
    %257 = arith.mulf %248, %254 : vector<8x32xf32>
    %258 = arith.addf %256, %257 : vector<8x32xf32>
    %259 = math.tanh %258 : vector<8x32xf32>
    %260 = arith.mulf %255, %259 : vector<8x32xf32>
    %c16_103 = arith.constant 16 : index
    %c0_104 = arith.constant 0 : index
    %261 = vector.load %arg14[%c16_103, %c0_104] : memref<64x32xf32, #tpu.memory_space<vmem>>, vector<8x32xf32>
    tpu.vector_store %arg14[%c16_103, %c0_104], %260 {strides = array<i32>} : memref<64x32xf32, #tpu.memory_space<vmem>>, vector<8x32xf32>,
    %c24_105 = arith.constant 24 : index
    %c0_106 = arith.constant 0 : index
    %262 = vector.load %arg15[%c24_105, %c0_106] : memref<64x128xf32, #tpu.memory_space<vmem>>, vector<8x128xf32>
    %cst_107 = arith.constant dense<0.000000e+00> : vector<8x128xf32>
    %263 = tpu.matmul %260, %193, %cst_107 {dimension_numbers = #tpu.dot_dimension_numbers<[1], [0], [0], [1], [0, 0, 1, 1], [], []>} : vector<8x32xf32>, vector<32x128xf32>, vector<8x128xf32> -> vector<8x128xf32>
    %264 = arith.addf %262, %263 : vector<8x128xf32>
    %265 = arith.negf %264 : vector<8x128xf32>
    %266 = math.exp %265 : vector<8x128xf32>
    %cst_108 = arith.constant 1.000000e+00 : f32
    %267 = vector.broadcast %cst_108 : f32 to vector<8x128xf32>
    %268 = arith.addf %267, %266 : vector<8x128xf32>
    %269 = arith.divf %267, %268 : vector<8x128xf32>
    %270 = vector.extract_strided_slice %269 {offsets = [0, 0], sizes = [8, 32], strides = [1, 1]} : vector<8x128xf32> to vector<8x32xf32>
    %271 = vector.extract_strided_slice %269 {offsets = [0, 32], sizes = [8, 32], strides = [1, 1]} : vector<8x128xf32> to vector<8x32xf32>
    %272 = vector.extract_strided_slice %269 {offsets = [0, 64], sizes = [8, 32], strides = [1, 1]} : vector<8x128xf32> to vector<8x32xf32>
    %cst_109 = arith.constant 2.000000e+00 : f32
    %273 = vector.broadcast %cst_109 : f32 to vector<8x32xf32>
    %274 = arith.mulf %273, %272 : vector<8x32xf32>
    %cst_110 = arith.constant 1.000000e+00 : f32
    %275 = vector.broadcast %cst_110 : f32 to vector<8x32xf32>
    %276 = arith.subf %274, %275 : vector<8x32xf32>
    %277 = vector.extract_strided_slice %269 {offsets = [0, 96], sizes = [8, 32], strides = [1, 1]} : vector<8x128xf32> to vector<8x32xf32>
    %278 = arith.mulf %271, %258 : vector<8x32xf32>
    %279 = arith.mulf %270, %276 : vector<8x32xf32>
    %280 = arith.addf %278, %279 : vector<8x32xf32>
    %281 = math.tanh %280 : vector<8x32xf32>
    %282 = arith.mulf %277, %281 : vector<8x32xf32>
    %c24_111 = arith.constant 24 : index
    %c0_112 = arith.constant 0 : index
    %283 = vector.load %arg14[%c24_111, %c0_112] : memref<64x32xf32, #tpu.memory_space<vmem>>, vector<8x32xf32>
    tpu.vector_store %arg14[%c24_111, %c0_112], %282 {strides = array<i32>} : memref<64x32xf32, #tpu.memory_space<vmem>>, vector<8x32xf32>,
    %c32_113 = arith.constant 32 : index
    %c0_114 = arith.constant 0 : index
    %284 = vector.load %arg15[%c32_113, %c0_114] : memref<64x128xf32, #tpu.memory_space<vmem>>, vector<8x128xf32>
    %cst_115 = arith.constant dense<0.000000e+00> : vector<8x128xf32>
    %285 = tpu.matmul %282, %193, %cst_115 {dimension_numbers = #tpu.dot_dimension_numbers<[1], [0], [0], [1], [0, 0, 1, 1], [], []>} : vector<8x32xf32>, vector<32x128xf32>, vector<8x128xf32> -> vector<8x128xf32>
    %286 = arith.addf %284, %285 : vector<8x128xf32>
    %287 = arith.negf %286 : vector<8x128xf32>
    %288 = math.exp %287 : vector<8x128xf32>
    %cst_116 = arith.constant 1.000000e+00 : f32
    %289 = vector.broadcast %cst_116 : f32 to vector<8x128xf32>
    %290 = arith.addf %289, %288 : vector<8x128xf32>
    %291 = arith.divf %289, %290 : vector<8x128xf32>
    %292 = vector.extract_strided_slice %291 {offsets = [0, 0], sizes = [8, 32], strides = [1, 1]} : vector<8x128xf32> to vector<8x32xf32>
    %293 = vector.extract_strided_slice %291 {offsets = [0, 32], sizes = [8, 32], strides = [1, 1]} : vector<8x128xf32> to vector<8x32xf32>
    %294 = vector.extract_strided_slice %291 {offsets = [0, 64], sizes = [8, 32], strides = [1, 1]} : vector<8x128xf32> to vector<8x32xf32>
    %cst_117 = arith.constant 2.000000e+00 : f32
    %295 = vector.broadcast %cst_117 : f32 to vector<8x32xf32>
    %296 = arith.mulf %295, %294 : vector<8x32xf32>
    %cst_118 = arith.constant 1.000000e+00 : f32
    %297 = vector.broadcast %cst_118 : f32 to vector<8x32xf32>
    %298 = arith.subf %296, %297 : vector<8x32xf32>
    %299 = vector.extract_strided_slice %291 {offsets = [0, 96], sizes = [8, 32], strides = [1, 1]} : vector<8x128xf32> to vector<8x32xf32>
    %300 = arith.mulf %293, %280 : vector<8x32xf32>
    %301 = arith.mulf %292, %298 : vector<8x32xf32>
    %302 = arith.addf %300, %301 : vector<8x32xf32>
    %303 = math.tanh %302 : vector<8x32xf32>
    %304 = arith.mulf %299, %303 : vector<8x32xf32>
    %c32_119 = arith.constant 32 : index
    %c0_120 = arith.constant 0 : index
    %305 = vector.load %arg14[%c32_119, %c0_120] : memref<64x32xf32, #tpu.memory_space<vmem>>, vector<8x32xf32>
    tpu.vector_store %arg14[%c32_119, %c0_120], %304 {strides = array<i32>} : memref<64x32xf32, #tpu.memory_space<vmem>>, vector<8x32xf32>,
    %c40_121 = arith.constant 40 : index
    %c0_122 = arith.constant 0 : index
    %306 = vector.load %arg15[%c40_121, %c0_122] : memref<64x128xf32, #tpu.memory_space<vmem>>, vector<8x128xf32>
    %cst_123 = arith.constant dense<0.000000e+00> : vector<8x128xf32>
    %307 = tpu.matmul %304, %193, %cst_123 {dimension_numbers = #tpu.dot_dimension_numbers<[1], [0], [0], [1], [0, 0, 1, 1], [], []>} : vector<8x32xf32>, vector<32x128xf32>, vector<8x128xf32> -> vector<8x128xf32>
    %308 = arith.addf %306, %307 : vector<8x128xf32>
    %309 = arith.negf %308 : vector<8x128xf32>
    %310 = math.exp %309 : vector<8x128xf32>
    %cst_124 = arith.constant 1.000000e+00 : f32
    %311 = vector.broadcast %cst_124 : f32 to vector<8x128xf32>
    %312 = arith.addf %311, %310 : vector<8x128xf32>
    %313 = arith.divf %311, %312 : vector<8x128xf32>
    %314 = vector.extract_strided_slice %313 {offsets = [0, 0], sizes = [8, 32], strides = [1, 1]} : vector<8x128xf32> to vector<8x32xf32>
    %315 = vector.extract_strided_slice %313 {offsets = [0, 32], sizes = [8, 32], strides = [1, 1]} : vector<8x128xf32> to vector<8x32xf32>
    %316 = vector.extract_strided_slice %313 {offsets = [0, 64], sizes = [8, 32], strides = [1, 1]} : vector<8x128xf32> to vector<8x32xf32>
    %cst_125 = arith.constant 2.000000e+00 : f32
    %317 = vector.broadcast %cst_125 : f32 to vector<8x32xf32>
    %318 = arith.mulf %317, %316 : vector<8x32xf32>
    %cst_126 = arith.constant 1.000000e+00 : f32
    %319 = vector.broadcast %cst_126 : f32 to vector<8x32xf32>
    %320 = arith.subf %318, %319 : vector<8x32xf32>
    %321 = vector.extract_strided_slice %313 {offsets = [0, 96], sizes = [8, 32], strides = [1, 1]} : vector<8x128xf32> to vector<8x32xf32>
    %322 = arith.mulf %315, %302 : vector<8x32xf32>
    %323 = arith.mulf %314, %320 : vector<8x32xf32>
    %324 = arith.addf %322, %323 : vector<8x32xf32>
    %325 = math.tanh %324 : vector<8x32xf32>
    %326 = arith.mulf %321, %325 : vector<8x32xf32>
    %c40_127 = arith.constant 40 : index
    %c0_128 = arith.constant 0 : index
    %327 = vector.load %arg14[%c40_127, %c0_128] : memref<64x32xf32, #tpu.memory_space<vmem>>, vector<8x32xf32>
    tpu.vector_store %arg14[%c40_127, %c0_128], %326 {strides = array<i32>} : memref<64x32xf32, #tpu.memory_space<vmem>>, vector<8x32xf32>,
    %c48_129 = arith.constant 48 : index
    %c0_130 = arith.constant 0 : index
    %328 = vector.load %arg15[%c48_129, %c0_130] : memref<64x128xf32, #tpu.memory_space<vmem>>, vector<8x128xf32>
    %cst_131 = arith.constant dense<0.000000e+00> : vector<8x128xf32>
    %329 = tpu.matmul %326, %193, %cst_131 {dimension_numbers = #tpu.dot_dimension_numbers<[1], [0], [0], [1], [0, 0, 1, 1], [], []>} : vector<8x32xf32>, vector<32x128xf32>, vector<8x128xf32> -> vector<8x128xf32>
    %330 = arith.addf %328, %329 : vector<8x128xf32>
    %331 = arith.negf %330 : vector<8x128xf32>
    %332 = math.exp %331 : vector<8x128xf32>
    %cst_132 = arith.constant 1.000000e+00 : f32
    %333 = vector.broadcast %cst_132 : f32 to vector<8x128xf32>
    %334 = arith.addf %333, %332 : vector<8x128xf32>
    %335 = arith.divf %333, %334 : vector<8x128xf32>
    %336 = vector.extract_strided_slice %335 {offsets = [0, 0], sizes = [8, 32], strides = [1, 1]} : vector<8x128xf32> to vector<8x32xf32>
    %337 = vector.extract_strided_slice %335 {offsets = [0, 32], sizes = [8, 32], strides = [1, 1]} : vector<8x128xf32> to vector<8x32xf32>
    %338 = vector.extract_strided_slice %335 {offsets = [0, 64], sizes = [8, 32], strides = [1, 1]} : vector<8x128xf32> to vector<8x32xf32>
    %cst_133 = arith.constant 2.000000e+00 : f32
    %339 = vector.broadcast %cst_133 : f32 to vector<8x32xf32>
    %340 = arith.mulf %339, %338 : vector<8x32xf32>
    %cst_134 = arith.constant 1.000000e+00 : f32
    %341 = vector.broadcast %cst_134 : f32 to vector<8x32xf32>
    %342 = arith.subf %340, %341 : vector<8x32xf32>
    %343 = vector.extract_strided_slice %335 {offsets = [0, 96], sizes = [8, 32], strides = [1, 1]} : vector<8x128xf32> to vector<8x32xf32>
    %344 = arith.mulf %337, %324 : vector<8x32xf32>
    %345 = arith.mulf %336, %342 : vector<8x32xf32>
    %346 = arith.addf %344, %345 : vector<8x32xf32>
    %347 = math.tanh %346 : vector<8x32xf32>
    %348 = arith.mulf %343, %347 : vector<8x32xf32>
    %c48_135 = arith.constant 48 : index
    %c0_136 = arith.constant 0 : index
    %349 = vector.load %arg14[%c48_135, %c0_136] : memref<64x32xf32, #tpu.memory_space<vmem>>, vector<8x32xf32>
    tpu.vector_store %arg14[%c48_135, %c0_136], %348 {strides = array<i32>} : memref<64x32xf32, #tpu.memory_space<vmem>>, vector<8x32xf32>,
    %c56_137 = arith.constant 56 : index
    %c0_138 = arith.constant 0 : index
    %350 = vector.load %arg15[%c56_137, %c0_138] : memref<64x128xf32, #tpu.memory_space<vmem>>, vector<8x128xf32>
    %cst_139 = arith.constant dense<0.000000e+00> : vector<8x128xf32>
    %351 = tpu.matmul %348, %193, %cst_139 {dimension_numbers = #tpu.dot_dimension_numbers<[1], [0], [0], [1], [0, 0, 1, 1], [], []>} : vector<8x32xf32>, vector<32x128xf32>, vector<8x128xf32> -> vector<8x128xf32>
    %352 = arith.addf %350, %351 : vector<8x128xf32>
    %353 = arith.negf %352 : vector<8x128xf32>
    %354 = math.exp %353 : vector<8x128xf32>
    %cst_140 = arith.constant 1.000000e+00 : f32
    %355 = vector.broadcast %cst_140 : f32 to vector<8x128xf32>
    %356 = arith.addf %355, %354 : vector<8x128xf32>
    %357 = arith.divf %355, %356 : vector<8x128xf32>
    %358 = vector.extract_strided_slice %357 {offsets = [0, 0], sizes = [8, 32], strides = [1, 1]} : vector<8x128xf32> to vector<8x32xf32>
    %359 = vector.extract_strided_slice %357 {offsets = [0, 32], sizes = [8, 32], strides = [1, 1]} : vector<8x128xf32> to vector<8x32xf32>
    %360 = vector.extract_strided_slice %357 {offsets = [0, 64], sizes = [8, 32], strides = [1, 1]} : vector<8x128xf32> to vector<8x32xf32>
    %cst_141 = arith.constant 2.000000e+00 : f32
    %361 = vector.broadcast %cst_141 : f32 to vector<8x32xf32>
    %362 = arith.mulf %361, %360 : vector<8x32xf32>
    %cst_142 = arith.constant 1.000000e+00 : f32
    %363 = vector.broadcast %cst_142 : f32 to vector<8x32xf32>
    %364 = arith.subf %362, %363 : vector<8x32xf32>
    %365 = vector.extract_strided_slice %357 {offsets = [0, 96], sizes = [8, 32], strides = [1, 1]} : vector<8x128xf32> to vector<8x32xf32>
    %366 = arith.mulf %359, %346 : vector<8x32xf32>
    %367 = arith.mulf %358, %364 : vector<8x32xf32>
    %368 = arith.addf %366, %367 : vector<8x32xf32>
    %369 = math.tanh %368 : vector<8x32xf32>
    %370 = arith.mulf %365, %369 : vector<8x32xf32>
    %c56_143 = arith.constant 56 : index
    %c0_144 = arith.constant 0 : index
    %371 = vector.load %arg14[%c56_143, %c0_144] : memref<64x32xf32, #tpu.memory_space<vmem>>, vector<8x32xf32>
    tpu.vector_store %arg14[%c56_143, %c0_144], %370 {strides = array<i32>} : memref<64x32xf32, #tpu.memory_space<vmem>>, vector<8x32xf32>,
    %c0_145 = arith.constant 0 : index
    %c0_146 = arith.constant 0 : index
    %372 = vector.load %arg14[%c0_145, %c0_146] : memref<64x32xf32, #tpu.memory_space<vmem>>, vector<64x32xf32>
    %c0_147 = arith.constant 0 : index
    %c0_148 = arith.constant 0 : index
    %373 = vector.load %arg8[%c0_147, %c0_148] : memref<32x32xf32, #tpu.memory_space<vmem>>, vector<32x32xf32>
    %cst_149 = arith.constant dense<0.000000e+00> : vector<64x32xf32>
    %374 = tpu.matmul %372, %373, %cst_149 {dimension_numbers = #tpu.dot_dimension_numbers<[1], [0], [0], [1], [0, 0, 1, 1], [], []>} : vector<64x32xf32>, vector<32x32xf32>, vector<64x32xf32> -> vector<64x32xf32>
    %c0_150 = arith.constant 0 : index
    %c0_151 = arith.constant 0 : index
    %375 = vector.load %arg9[%c0_150, %c0_151] : memref<1x32xf32, #tpu.memory_space<vmem>>, vector<1x32xf32>
    %376 = vector.broadcast %375 : vector<1x32xf32> to vector<64x32xf32>
    %377 = arith.addf %374, %376 : vector<64x32xf32>
    %cst_152 = arith.constant 0.000000e+00 : f32
    %378 = vector.broadcast %cst_152 : f32 to vector<64x32xf32>
    %379 = arith.maximumf %377, %378 : vector<64x32xf32>
    %c0_153 = arith.constant 0 : index
    %c0_154 = arith.constant 0 : index
    %380 = vector.load %arg10[%c0_153, %c0_154] : memref<1x32xf32, #tpu.memory_space<vmem>>, vector<1x32xf32>
    %381 = vector.broadcast %380 : vector<1x32xf32> to vector<64x32xf32>
    %382 = arith.mulf %379, %381 : vector<64x32xf32>
    %cst_155 = arith.constant dense<0.000000e+00> : vector<64xf32>
    %383 = vector.multi_reduction <add>, %382, %cst_155 [1] : vector<64x32xf32> to vector<64xf32>
    %384 = vector.shape_cast %383 : vector<64xf32> to vector<64x1xf32>
    %c0_156 = arith.constant 0 : index
    %c0_157 = arith.constant 0 : index
    %385 = vector.load %arg11[%c0_156, %c0_157] : memref<1x1xf32, #tpu.memory_space<vmem>>, vector<1x1xf32>
    %386 = vector.broadcast %385 : vector<1x1xf32> to vector<64x1xf32>
    %387 = arith.addf %384, %386 : vector<64x1xf32>
    %c0_158 = arith.constant 0 : index
    %c0_159 = arith.constant 0 : index
    %388 = vector.load %arg12[%c0_158, %c0_159] : memref<64x1xf32, #tpu.memory_space<vmem>>, vector<64x1xf32>
    tpu.vector_store %arg12[%c0_158, %c0_159], %387 {strides = array<i32>} : memref<64x1xf32, #tpu.memory_space<vmem>>, vector<64x1xf32>,
    return
  }
  func.func @transform_0(%arg0: i32) -> (i32, i32) {
    %c0_i32 = arith.constant 0 : i32
    %c0_i32_0 = arith.constant 0 : i32
    %c0_i32_1 = arith.constant 0 : i32
    return %c0_i32, %c0_i32_0 : i32, i32
  }
  func.func @transform_1(%arg0: i32) -> (i32, i32) {
    %c0_i32 = arith.constant 0 : i32
    %c0_i32_0 = arith.constant 0 : i32
    %c0_i32_1 = arith.constant 0 : i32
    return %c0_i32, %c0_i32_0 : i32, i32
  }
  func.func @transform_2(%arg0: i32) -> (i32, i32) {
    %c0_i32 = arith.constant 0 : i32
    %c0_i32_0 = arith.constant 0 : i32
    %c0_i32_1 = arith.constant 0 : i32
    return %c0_i32, %c0_i32_0 : i32, i32
  }
  func.func @transform_3(%arg0: i32) -> (i32, i32) {
    %c0_i32 = arith.constant 0 : i32
    %c0_i32_0 = arith.constant 0 : i32
    %c0_i32_1 = arith.constant 0 : i32
    return %c0_i32, %c0_i32_0 : i32, i32
  }
  func.func @transform_4(%arg0: i32) -> (i32, i32) {
    %c0_i32 = arith.constant 0 : i32
    %c0_i32_0 = arith.constant 0 : i32
    %c0_i32_1 = arith.constant 0 : i32
    return %c0_i32, %c0_i32_0 : i32, i32
  }
  func.func @transform_5(%arg0: i32) -> (i32, i32) {
    %c0_i32 = arith.constant 0 : i32
    %c0_i32_0 = arith.constant 0 : i32
    %c0_i32_1 = arith.constant 0 : i32
    return %c0_i32, %c0_i32_0 : i32, i32
  }
  func.func @transform_6(%arg0: i32) -> (i32, i32) {
    %c0_i32 = arith.constant 0 : i32
    %c0_i32_0 = arith.constant 0 : i32
    %c0_i32_1 = arith.constant 0 : i32
    return %c0_i32, %c0_i32_0 : i32, i32
  }
  func.func @transform_7(%arg0: i32) -> (i32, i32) {
    %c0_i32 = arith.constant 0 : i32
    %c0_i32_0 = arith.constant 0 : i32
    %c0_i32_1 = arith.constant 0 : i32
    return %c0_i32, %c0_i32_0 : i32, i32
  }
  func.func @transform_8(%arg0: i32) -> (i32, i32) {
    %c0_i32 = arith.constant 0 : i32
    %c0_i32_0 = arith.constant 0 : i32
    %c0_i32_1 = arith.constant 0 : i32
    return %c0_i32, %c0_i32_0 : i32, i32
  }
  func.func @transform_9(%arg0: i32) -> (i32, i32) {
    %c0_i32 = arith.constant 0 : i32
    %c0_i32_0 = arith.constant 0 : i32
    %c0_i32_1 = arith.constant 0 : i32
    return %c0_i32, %c0_i32_0 : i32, i32
  }
  func.func @transform_10(%arg0: i32) -> (i32, i32) {
    %c0_i32 = arith.constant 0 : i32
    %c0_i32_0 = arith.constant 0 : i32
    %c0_i32_1 = arith.constant 0 : i32
    return %c0_i32, %c0_i32_0 : i32, i32
  }
  func.func @transform_11(%arg0: i32) -> (i32, i32) {
    %c0_i32 = arith.constant 0 : i32
    %c0_i32_0 = arith.constant 0 : i32
    %c0_i32_1 = arith.constant 0 : i32
    return %c0_i32, %c0_i32_0 : i32, i32
  }
}

</mosaic_0001>

<llo_original>
// kernel: tpu_custom_call.1
$region0: #{tpu_custom_call.1}
  #allocation0 [shape = 'u32[]', space=smem, size = 0x4, offset = 0x4, fixed_abs, tag = 'smem constant byte address 0x4 - core index']
  #allocation1 [shape = 'u32[144,128]{1,0:T(1,128)}', space=vmem, size = 0x12000, scoped, tag = 'internal scratch']
  #allocation2 [shape = 'f32[64,32]{1,0:T(8,128)}', space=vmem, size = 0x8000, scoped, tag = 'scratch operand']
  #allocation3 [shape = 'f32[64,32]{1,0:T(8,128)}', space=vmem, size = 0x8000, scoped, tag = 'scratch operand']
  #allocation4 [shape = 'f32[64,128]{1,0:T(8,128)}', space=vmem, size = 0x8000, scoped, tag = 'scratch operand']
  #allocation5 [shape = 'f32[1,1]{1,0:T(1,128)S(1)}', space=vmem, size = 0x200, scoped, tag = 'scoped memory for tpu_custom_call.1']
  %s0 = inlined_call_operand.vmem [shape: f32[64,16], index: 0, kind: input, shape index: {}]
  %s1 = inlined_call_operand.hbm [shape: f32[16,128], index: 1, kind: input, shape index: {}]
  %s2 = inlined_call_operand.vmem [shape: f32[32,128], index: 2, kind: input, shape index: {}]
  %s3 = inlined_call_operand.vmem [shape: f32[1,128], index: 3, kind: input, shape index: {}]
  %s4 = inlined_call_operand.vmem [shape: f32[32,128], index: 4, kind: input, shape index: {}]
  %s5 = inlined_call_operand.vmem [shape: f32[32,128], index: 5, kind: input, shape index: {}]
  %s6 = inlined_call_operand.vmem [shape: f32[1,128], index: 6, kind: input, shape index: {}]
  %s7 = inlined_call_operand.hbm [shape: f32[32,32], index: 7, kind: input, shape index: {}]
  %s8 = inlined_call_operand.vmem [shape: f32[1,32], index: 8, kind: input, shape index: {}]
  %s9 = inlined_call_operand.vmem [shape: f32[1,32], index: 9, kind: input, shape index: {}]
  %s10 = inlined_call_operand.<no memory space> [shape: f32[1,1], index: 10, kind: input, shape index: {}]
  %s11 = inlined_call_operand.vmem [shape: f32[64,1], index: 11, kind: output, shape index: {}]
  %s12 = sld [smem:[#allocation0]]
  $region62: #{tpu_custom_call.1} parent=0
    _
  %s14 = ssub.s32 1, %s12
  %s15 = scalar_select 0, %s14, %s12
  %v16 = vstv %s10
  %17 = vst [vmem:[#allocation5] sm:$0x1] %v16
  $region1: #{tpu_custom_call.1} parent=0
    #allocation6 [shape = 'u8[8192]{0}', space=vmem, size = 0x2000, scoped, tag = 'input window, operand 1, single buffered']
    #allocation7 [shape = 's32[1]{0}', space=sflag, size = 0x4, scoped, tag = 'scoped memory for tpu_custom_call.1']
    #allocation8 [shape = 'u8[16384]{0}', space=vmem, size = 0x4000, scoped, tag = 'input window, operand 7, single buffered']
    #allocation9 [shape = 's32[1]{0}', space=sflag, size = 0x4, scoped, tag = 'scoped memory for tpu_custom_call.1']
    %18 = vsyncpa [#allocation7], 0
    %19 = vsyncpa [#allocation9], 0
    // Predicated region
    $region2: #{tpu_custom_call.1} parent=1 // pred_check
      _
    $region3: #{tpu_custom_call.1} parent=1 // pred_check_branch
      %21 = sbr.rel (0) target = $region5
    $region4: #{tpu_custom_call.1} parent=1 // pred_region
      _
    $region5: #{tpu_custom_call.1} parent=1 // pred_fallthru
      _
    // Predicated region
    $region6: #{tpu_custom_call.1} parent=1 // pred_check
      _
    $region7: #{tpu_custom_call.1} parent=1 // pred_check_branch
      %23 = sbr.rel (0) target = $region9
    $region8: #{tpu_custom_call.1} parent=1 // pred_region
      %s25 = ssub.s32 256, 256
      %26 = vsyncadd [#allocation7], %s25
      %s27 = sshll.u32 [#allocation6], 4
      %s28 = int_to_ptr.vmem [resolvable:$true] %s27
      %33 = dma.hbm_to_vmem [thread:$0]  %s1, 256, %s28, [#allocation7], 128, 128, 8
    $region9: #{tpu_custom_call.1} parent=1 // pred_fallthru
      _
    // Predicated region
    $region10: #{tpu_custom_call.1} parent=1 // pred_check
      _
    $region11: #{tpu_custom_call.1} parent=1 // pred_check_branch
      %35 = sbr.rel (0) target = $region13
    $region12: #{tpu_custom_call.1} parent=1 // pred_region
      _
    $region13: #{tpu_custom_call.1} parent=1 // pred_fallthru
      _
    // Predicated region
    $region14: #{tpu_custom_call.1} parent=1 // pred_check
      _
    $region15: #{tpu_custom_call.1} parent=1 // pred_check_branch
      %37 = sbr.rel (0) target = $region17
    $region16: #{tpu_custom_call.1} parent=1 // pred_region
      _
    $region17: #{tpu_custom_call.1} parent=1 // pred_fallthru
      _
    // Predicated region
    $region18: #{tpu_custom_call.1} parent=1 // pred_check
      _
    $region19: #{tpu_custom_call.1} parent=1 // pred_check_branch
      %39 = sbr.rel (0) target = $region21
    $region20: #{tpu_custom_call.1} parent=1 // pred_region
      _
    $region21: #{tpu_custom_call.1} parent=1 // pred_fallthru
      _
    // Predicated region
    $region22: #{tpu_custom_call.1} parent=1 // pred_check
      _
    $region23: #{tpu_custom_call.1} parent=1 // pred_check_branch
      %41 = sbr.rel (0) target = $region25
    $region24: #{tpu_custom_call.1} parent=1 // pred_region
      _
    $region25: #{tpu_custom_call.1} parent=1 // pred_fallthru
      _
    // Predicated region
    $region26: #{tpu_custom_call.1} parent=1 // pred_check
      _
    $region27: #{tpu_custom_call.1} parent=1 // pred_check_branch
      %43 = sbr.rel (0) target = $region29
    $region28: #{tpu_custom_call.1} parent=1 // pred_region
      _
    $region29: #{tpu_custom_call.1} parent=1 // pred_fallthru
      _
    // Predicated region
    $region30: #{tpu_custom_call.1} parent=1 // pred_check
      _
    $region31: #{tpu_custom_call.1} parent=1 // pred_check_branch
      %45 = sbr.rel (0) target = $region33
    $region32: #{tpu_custom_call.1} parent=1 // pred_region
      %s47 = ssub.s32 512, 512
      %48 = vsyncadd [#allocation9], %s47
      %s49 = sshll.u32 [#allocation8], 4
      %s50 = int_to_ptr.vmem [resolvable:$true] %s49
      %55 = dma.hbm_to_vmem [thread:$0]  %s7, 512, %s50, [#allocation9], 128, 128, 8
    $region33: #{tpu_custom_call.1} parent=1 // pred_fallthru
      _
    // Predicated region
    $region34: #{tpu_custom_call.1} parent=1 // pred_check
      _
    $region35: #{tpu_custom_call.1} parent=1 // pred_check_branch
      %57 = sbr.rel (0) target = $region37
    $region36: #{tpu_custom_call.1} parent=1 // pred_region
      _
    $region37: #{tpu_custom_call.1} parent=1 // pred_fallthru
      _
    // Predicated region
    $region38: #{tpu_custom_call.1} parent=1 // pred_check
      _
    $region39: #{tpu_custom_call.1} parent=1 // pred_check_branch
      %59 = sbr.rel (0) target = $region41
    $region40: #{tpu_custom_call.1} parent=1 // pred_region
      _
    $region41: #{tpu_custom_call.1} parent=1 // pred_fallthru
      _
    // Predicated region
    $region42: #{tpu_custom_call.1} parent=1 // pred_check
      _
    $region43: #{tpu_custom_call.1} parent=1 // pred_check_branch
      %61 = sbr.rel (0) target = $region45
    $region44: #{tpu_custom_call.1} parent=1 // pred_region
      _
    $region45: #{tpu_custom_call.1} parent=1 // pred_fallthru
      _
    // Predicated region
    $region46: #{tpu_custom_call.1} parent=1 // pred_check
      _
    $region47: #{tpu_custom_call.1} parent=1 // pred_check_branch
      %63 = sbr.rel (0) target = $region49
    $region48: #{tpu_custom_call.1} parent=1 // pred_region
      %64 = dma.done [#allocation7], 256
    $region49: #{tpu_custom_call.1} parent=1 // pred_fallthru
      _
    // Predicated region
    $region50: #{tpu_custom_call.1} parent=1 // pred_check
      _
    $region51: #{tpu_custom_call.1} parent=1 // pred_check_branch
      %66 = sbr.rel (0) target = $region53
    $region52: #{tpu_custom_call.1} parent=1 // pred_region
      %67 = dma.done [#allocation9], 512
    $region53: #{tpu_custom_call.1} parent=1 // pred_fallthru
      _
    %v68 = vld [vmem:[%s0] sm:$0xff]
    %v69 = vld [vmem:[%s0 + $0x8] sm:$0xff]
    %v70 = vld [vmem:[%s0 + $0x10] sm:$0xff]
    %v71 = vld [vmem:[%s0 + $0x18] sm:$0xff]
    %v72 = vld [vmem:[%s0 + $0x20] sm:$0xff]
    %v73 = vld [vmem:[%s0 + $0x28] sm:$0xff]
    %v74 = vld [vmem:[%s0 + $0x30] sm:$0xff]
    %v75 = vld [vmem:[%s0 + $0x38] sm:$0xff]
    %v76 = vld [vmem:[#allocation6] sm:$0xff]
    %v77 = vld [vmem:[#allocation6 + $0x8] sm:$0xff]
    %v78 = vld [vmem:[%s3] sm:$0x1]
    %v80 = vlaneseq
    %v81 = vshrl.u32 %v80, 7
    %v82 = vsub.s32 0, %v81
    %v83 = vrot.slane %v78, %v82
    %vm85 = vcmask 130048
    %v87 = vsel %vm85, %v68, 0
    %v90 = vsel %vm85, %v69, 0
    %v93 = vsel %vm85, %v70, 0
    %v96 = vsel %vm85, %v71, 0
    %v99 = vsel %vm85, %v72, 0
    %v102 = vsel %vm85, %v73, 0
    %v105 = vsel %vm85, %v74, 0
    %v108 = vsel %vm85, %v75, 0
    %110 = vmatprep.subr.mxu0 0.0
    %111 = vmatpush1.msra.mxu0 %v76
    %112 = vmatprep.subr.mxu0 0.0
    %113 = vmatpush1.msra.mxu0 %v77
    %114 = vmatprep.subr.mxu0 0.0
    %115 = vmatpush1.msra.mxu0 0.0
    %116 = vmatprep.subr.mxu0 0.0
    %117 = vmatpush1.msra.mxu0 0.0
    %118 = vmatprep.subr.mxu0 0.0
    %119 = vmatpush1.msra.mxu0 0.0
    %120 = vmatprep.subr.mxu0 0.0
    %121 = vmatpush1.msra.mxu0 0.0
    %122 = vmatprep.subr.mxu0 0.0
    %123 = vmatpush1.msra.mxu0 0.0
    %124 = vmatprep.subr.mxu0 0.0
    %125 = vmatpush1.msra.mxu0 0.0
    %126 = vmatprep.subr.mxu0 0.0
    %127 = vmatpush1.msra.mxu0 0.0
    %128 = vmatprep.subr.mxu0 0.0
    %129 = vmatpush1.msra.mxu0 0.0
    %130 = vmatprep.subr.mxu0 0.0
    %131 = vmatpush1.msra.mxu0 0.0
    %132 = vmatprep.subr.mxu0 0.0
    %133 = vmatpush1.msra.mxu0 0.0
    %134 = vmatprep.subr.mxu0 0.0
    %135 = vmatpush1.msra.mxu0 0.0
    %136 = vmatprep.subr.mxu0 0.0
    %137 = vmatpush1.msra.mxu0 0.0
    %138 = vmatprep.subr.mxu0 0.0
    %139 = vmatpush1.msra.mxu0 0.0
    %140 = vmatprep.subr.mxu0 0.0
    %141 = vmatpush1.msra.mxu0 0.0
    %142 = vmatprep.subr.mxu0 0.0
    %143 = vmatpush1.msra.mxu0 0.0
    %144 = vmatprep.subr.mxu0 0.0
    %145 = vmatpush1.msra.mxu0 0.0
    %146 = vmatprep.subr.mxu0 0.0
    %147 = vmatpush1.msra.mxu0 0.0
    %148 = vmatprep.subr.mxu0 0.0
    %149 = vmatpush1.msra.mxu0 0.0
    %150 = vmatprep.subr.mxu0 0.0
    %151 = vmatpush1.msra.mxu0 0.0
    %152 = vmatprep.subr.mxu0 0.0
    %153 = vmatpush1.msra.mxu0 0.0
    %154 = vmatprep.subr.mxu0 0.0
    %155 = vmatpush1.msra.mxu0 0.0
    %156 = vmatprep.subr.mxu0 0.0
    %157 = vmatpush1.msra.mxu0 0.0
    %158 = vmatprep.subr.mxu0 0.0
    %159 = vmatpush1.msra.mxu0 0.0
    %160 = vmatprep.subr.mxu0 0.0
    %161 = vmatpush1.msra.mxu0 0.0
    %162 = vmatprep.subr.mxu0 0.0
    %163 = vmatpush1.msra.mxu0 0.0
    %164 = vmatprep.subr.mxu0 0.0
    %165 = vmatpush1.msra.mxu0 0.0
    %166 = vmatprep.subr.mxu0 0.0
    %167 = vmatpush1.msra.mxu0 0.0
    %168 = vmatprep.subr.mxu0 0.0
    %169 = vmatpush1.msra.mxu0 0.0
    %170 = vmatprep.subr.mxu0 0.0
    %171 = vmatpush1.msra.mxu0 0.0
    %172 = vmatprep.subr.mxu0 0.0
    %173 = vmatpush1.msra.mxu0 0.0
    %174 = vmatprep.mubr.f32.mxu0 0.0
    %175 = vmatmul.mubr.f32.gmra.mrb[0].mxu0 %v87
    %v176 = vpop.f32.mrb[0].mxu0
    %v177 = vadd.f32 %v83, %v176
    %v178 = vpop.f32.mrb[0].mxu0
    %179 = vmatprep.mubr.f32.mxu0 0.0
    %180 = vmatmul.mubr.f32.gmra.mrb[0].mxu0 %v90
    %v181 = vpop.f32.mrb[0].mxu0
    %v182 = vadd.f32 %v83, %v181
    %v183 = vpop.f32.mrb[0].mxu0
    %184 = vmatprep.mubr.f32.mxu0 0.0
    %185 = vmatmul.mubr.f32.gmra.mrb[0].mxu0 %v93
    %v186 = vpop.f32.mrb[0].mxu0
    %v187 = vadd.f32 %v83, %v186
    %v188 = vpop.f32.mrb[0].mxu0
    %189 = vmatprep.mubr.f32.mxu0 0.0
    %190 = vmatmul.mubr.f32.gmra.mrb[0].mxu0 %v96
    %v191 = vpop.f32.mrb[0].mxu0
    %v192 = vadd.f32 %v83, %v191
    %v193 = vpop.f32.mrb[0].mxu0
    %194 = vmatprep.mubr.f32.mxu0 0.0
    %195 = vmatmul.mubr.f32.gmra.mrb[0].mxu0 %v99
    %v196 = vpop.f32.mrb[0].mxu0
    %v197 = vadd.f32 %v83, %v196
    %v198 = vpop.f32.mrb[0].mxu0
    %199 = vmatprep.mubr.f32.mxu0 0.0
    %200 = vmatmul.mubr.f32.gmra.mrb[0].mxu0 %v102
    %v201 = vpop.f32.mrb[0].mxu0
    %v202 = vadd.f32 %v83, %v201
    %v203 = vpop.f32.mrb[0].mxu0
    %204 = vmatprep.mubr.f32.mxu0 0.0
    %205 = vmatmul.mubr.f32.gmra.mrb[0].mxu0 %v105
    %v206 = vpop.f32.mrb[0].mxu0
    %v207 = vadd.f32 %v83, %v206
    %v208 = vpop.f32.mrb[0].mxu0
    %209 = vmatprep.mubr.f32.mxu0 0.0
    %210 = vmatmul.mubr.f32.gmra.mrb[0].mxu0 %v108
    %v211 = vpop.f32.mrb[0].mxu0
    %v212 = vadd.f32 %v83, %v211
    %v213 = vpop.f32.mrb[0].mxu0
    %214 = vdwg.mxu0
    %215 = vst [vmem:[#allocation4] sm:$0xff] %v177
    %216 = vst [vmem:[#allocation4 + $0x8] sm:$0xff] %v182
    %217 = vst [vmem:[#allocation4 + $0x10] sm:$0xff] %v187
    %218 = vst [vmem:[#allocation4 + $0x18] sm:$0xff] %v192
    %219 = vst [vmem:[#allocation4 + $0x20] sm:$0xff] %v197
    %220 = vst [vmem:[#allocation4 + $0x28] sm:$0xff] %v202
    %221 = vst [vmem:[#allocation4 + $0x30] sm:$0xff] %v207
    %222 = vst [vmem:[#allocation4 + $0x38] sm:$0xff] %v212
    %v223 = vld [vmem:[%s2] sm:$0xff]
    %v224 = vld [vmem:[%s2 + $0x8] sm:$0xff]
    %v225 = vld [vmem:[%s2 + $0x10] sm:$0xff]
    %v226 = vld [vmem:[%s2 + $0x18] sm:$0xff]
    %v227 = vld [vmem:[#allocation4] sm:$0xff]
    %vm228 = vcmask 261120
    %v230 = vsel %vm228, 0.0, 0
    %232 = vmatprep.subr.mxu0 0.0
    %233 = vmatpush1.msra.mxu0 %v223
    %234 = vmatprep.subr.mxu0 0.0
    %235 = vmatpush1.msra.mxu0 %v224
    %236 = vmatprep.subr.mxu0 0.0
    %237 = vmatpush1.msra.mxu0 %v225
    %238 = vmatprep.subr.mxu0 0.0
    %239 = vmatpush1.msra.mxu0 %v226
    %240 = vmatprep.subr.mxu0 0.0
    %241 = vmatpush1.msra.mxu0 0.0
    %242 = vmatprep.subr.mxu0 0.0
    %243 = vmatpush1.msra.mxu0 0.0
    %244 = vmatprep.subr.mxu0 0.0
    %245 = vmatpush1.msra.mxu0 0.0
    %246 = vmatprep.subr.mxu0 0.0
    %247 = vmatpush1.msra.mxu0 0.0
    %248 = vmatprep.subr.mxu0 0.0
    %249 = vmatpush1.msra.mxu0 0.0
    %250 = vmatprep.subr.mxu0 0.0
    %251 = vmatpush1.msra.mxu0 0.0
    %252 = vmatprep.subr.mxu0 0.0
    %253 = vmatpush1.msra.mxu0 0.0
    %254 = vmatprep.subr.mxu0 0.0
    %255 = vmatpush1.msra.mxu0 0.0
    %256 = vmatprep.subr.mxu0 0.0
    %257 = vmatpush1.msra.mxu0 0.0
    %258 = vmatprep.subr.mxu0 0.0
    %259 = vmatpush1.msra.mxu0 0.0
    %260 = vmatprep.subr.mxu0 0.0
    %261 = vmatpush1.msra.mxu0 0.0
    %262 = vmatprep.subr.mxu0 0.0
    %263 = vmatpush1.msra.mxu0 0.0
    %264 = vmatprep.subr.mxu0 0.0
    %265 = vmatpush1.msra.mxu0 0.0
    %266 = vmatprep.subr.mxu0 0.0
    %267 = vmatpush1.msra.mxu0 0.0
    %268 = vmatprep.subr.mxu0 0.0
    %269 = vmatpush1.msra.mxu0 0.0
    %270 = vmatprep.subr.mxu0 0.0
    %271 = vmatpush1.msra.mxu0 0.0
    %272 = vmatprep.subr.mxu0 0.0
    %273 = vmatpush1.msra.mxu0 0.0
    %274 = vmatprep.subr.mxu0 0.0
    %275 = vmatpush1.msra.mxu0 0.0
    %276 = vmatprep.subr.mxu0 0.0
    %277 = vmatpush1.msra.mxu0 0.0
    %278 = vmatprep.subr.mxu0 0.0
    %279 = vmatpush1.msra.mxu0 0.0
    %280 = vmatprep.subr.mxu0 0.0
    %281 = vmatpush1.msra.mxu0 0.0
    %282 = vmatprep.subr.mxu0 0.0
    %283 = vmatpush1.msra.mxu0 0.0
    %284 = vmatprep.subr.mxu0 0.0
    %285 = vmatpush1.msra.mxu0 0.0
    %286 = vmatprep.subr.mxu0 0.0
    %287 = vmatpush1.msra.mxu0 0.0
    %288 = vmatprep.subr.mxu0 0.0
    %289 = vmatpush1.msra.mxu0 0.0
    %290 = vmatprep.subr.mxu0 0.0
    %291 = vmatpush1.msra.mxu0 0.0
    %292 = vmatprep.subr.mxu0 0.0
    %293 = vmatpush1.msra.mxu0 0.0
    %294 = vmatprep.subr.mxu0 0.0
    %295 = vmatpush1.msra.mxu0 0.0
    %296 = vmatprep.mubr.f32.mxu0 0.0
    %297 = vmatmul.mubr.f32.gmra.mrb[0].mxu0 %v230
    %v298 = vpop.f32.mrb[0].mxu0
    %v299 = vadd.f32 0.0, %v298
    %v300 = vpop.f32.mrb[0].mxu0
    %301 = vdwg.mxu0
    %v302 = vadd.f32 %v227, %v299
    %v303 = vxor.u32 %v302, 2147483648
    %v304 = vmul.f32 %v303, 1.442695
    %v305 = vpow.pop %v304
    %v306 = vadd.f32 %v305, 1.0
    %v307 = vrcp.pop %v306
    %v308 = vmul.f32 1.0, %v307
    %v309 = vmul.f32 %v308, 2.0
    %v310 = vsub.f32 %v309, 1.0
    %v311 = vmul.f32 %v308, 0.0
    %313 = vrot.lane.b32.xlu0 %v310, 64
    %v314 = vpop.permute.xlu0 %313
    %v316 = vmul.f32 %v308, %v314
    %318 = vrot.lane.b32.xlu0 %v316, 32
    %v319 = vpop.permute.xlu0 %318
    %v321 = vadd.f32 %v311, %v319
    %v322 = vtanh.pop %v321
    %324 = vrot.lane.b32.xlu0 %v322, 64
    %v325 = vpop.permute.xlu0 %324
    %v327 = vmul.f32 %v308, %v325
    %329 = vrot.lane.b32.xlu0 %v327, 32
    %v330 = vpop.permute.xlu0 %329
    %332 = vst.msk [vmem:[#allocation2] sm:$0xff] %vm228, %v330
    %v333 = vld [vmem:[#allocation4 + $0x8] sm:$0xff]
    %v334 = vsel %vm228, %v330, 0
    %336 = vmatprep.subr.mxu0 0.0
    %337 = vmatpush1.msra.mxu0 %v223
    %338 = vmatprep.subr.mxu0 0.0
    %339 = vmatpush1.msra.mxu0 %v224
    %340 = vmatprep.subr.mxu0 0.0
    %341 = vmatpush1.msra.mxu0 %v225
    %342 = vmatprep.subr.mxu0 0.0
    %343 = vmatpush1.msra.mxu0 %v226
    %344 = vmatprep.subr.mxu0 0.0
    %345 = vmatpush1.msra.mxu0 0.0
    %346 = vmatprep.subr.mxu0 0.0
    %347 = vmatpush1.msra.mxu0 0.0
    %348 = vmatprep.subr.mxu0 0.0
    %349 = vmatpush1.msra.mxu0 0.0
    %350 = vmatprep.subr.mxu0 0.0
    %351 = vmatpush1.msra.mxu0 0.0
    %352 = vmatprep.subr.mxu0 0.0
    %353 = vmatpush1.msra.mxu0 0.0
    %354 = vmatprep.subr.mxu0 0.0
    %355 = vmatpush1.msra.mxu0 0.0
    %356 = vmatprep.subr.mxu0 0.0
    %357 = vmatpush1.msra.mxu0 0.0
    %358 = vmatprep.subr.mxu0 0.0
    %359 = vmatpush1.msra.mxu0 0.0
    %360 = vmatprep.subr.mxu0 0.0
    %361 = vmatpush1.msra.mxu0 0.0
    %362 = vmatprep.subr.mxu0 0.0
    %363 = vmatpush1.msra.mxu0 0.0
    %364 = vmatprep.subr.mxu0 0.0
    %365 = vmatpush1.msra.mxu0 0.0
    %366 = vmatprep.subr.mxu0 0.0
    %367 = vmatpush1.msra.mxu0 0.0
    %368 = vmatprep.subr.mxu0 0.0
    %369 = vmatpush1.msra.mxu0 0.0
    %370 = vmatprep.subr.mxu0 0.0
    %371 = vmatpush1.msra.mxu0 0.0
    %372 = vmatprep.subr.mxu0 0.0
    %373 = vmatpush1.msra.mxu0 0.0
    %374 = vmatprep.subr.mxu0 0.0
    %375 = vmatpush1.msra.mxu0 0.0
    %376 = vmatprep.subr.mxu0 0.0
    %377 = vmatpush1.msra.mxu0 0.0
    %378 = vmatprep.subr.mxu0 0.0
    %379 = vmatpush1.msra.mxu0 0.0
    %380 = vmatprep.subr.mxu0 0.0
    %381 = vmatpush1.msra.mxu0 0.0
    %382 = vmatprep.subr.mxu0 0.0
    %383 = vmatpush1.msra.mxu0 0.0
    %384 = vmatprep.subr.mxu0 0.0
    %385 = vmatpush1.msra.mxu0 0.0
    %386 = vmatprep.subr.mxu0 0.0
    %387 = vmatpush1.msra.mxu0 0.0
    %388 = vmatprep.subr.mxu0 0.0
    %389 = vmatpush1.msra.mxu0 0.0
    %390 = vmatprep.subr.mxu0 0.0
    %391 = vmatpush1.msra.mxu0 0.0
    %392 = vmatprep.subr.mxu0 0.0
    %393 = vmatpush1.msra.mxu0 0.0
    %394 = vmatprep.subr.mxu0 0.0
    %395 = vmatpush1.msra.mxu0 0.0
    %396 = vmatprep.subr.mxu0 0.0
    %397 = vmatpush1.msra.mxu0 0.0
    %398 = vmatprep.subr.mxu0 0.0
    %399 = vmatpush1.msra.mxu0 0.0
    %400 = vmatprep.mubr.f32.mxu0 0.0
    %401 = vmatmul.mubr.f32.gmra.mrb[0].mxu0 %v334
    %v402 = vpop.f32.mrb[0].mxu0
    %v403 = vadd.f32 0.0, %v402
    %v404 = vpop.f32.mrb[0].mxu0
    %405 = vdwg.mxu0
    %v406 = vadd.f32 %v333, %v403
    %v407 = vxor.u32 %v406, 2147483648
    %v408 = vmul.f32 %v407, 1.442695
    %v409 = vpow.pop %v408
    %v410 = vadd.f32 %v409, 1.0
    %v411 = vrcp.pop %v410
    %v412 = vmul.f32 1.0, %v411
    %v413 = vmul.f32 %v412, 2.0
    %v414 = vsub.f32 %v413, 1.0
    %v415 = vmul.f32 %v412, %v321
    %417 = vrot.lane.b32.xlu0 %v414, 64
    %v418 = vpop.permute.xlu0 %417
    %v420 = vmul.f32 %v412, %v418
    %422 = vrot.lane.b32.xlu0 %v420, 32
    %v423 = vpop.permute.xlu0 %422
    %v425 = vadd.f32 %v415, %v423
    %v426 = vtanh.pop %v425
    %428 = vrot.lane.b32.xlu0 %v426, 64
    %v429 = vpop.permute.xlu0 %428
    %v431 = vmul.f32 %v412, %v429
    %433 = vrot.lane.b32.xlu0 %v431, 32
    %v434 = vpop.permute.xlu0 %433
    %436 = vst.msk [vmem:[#allocation2 + $0x8] sm:$0xff] %vm228, %v434
    %v437 = vld [vmem:[#allocation4 + $0x10] sm:$0xff]
    %v438 = vsel %vm228, %v434, 0
    %440 = vmatprep.subr.mxu0 0.0
    %441 = vmatpush1.msra.mxu0 %v223
    %442 = vmatprep.subr.mxu0 0.0
    %443 = vmatpush1.msra.mxu0 %v224
    %444 = vmatprep.subr.mxu0 0.0
    %445 = vmatpush1.msra.mxu0 %v225
    %446 = vmatprep.subr.mxu0 0.0
    %447 = vmatpush1.msra.mxu0 %v226
    %448 = vmatprep.subr.mxu0 0.0
    %449 = vmatpush1.msra.mxu0 0.0
    %450 = vmatprep.subr.mxu0 0.0
    %451 = vmatpush1.msra.mxu0 0.0
    %452 = vmatprep.subr.mxu0 0.0
    %453 = vmatpush1.msra.mxu0 0.0
    %454 = vmatprep.subr.mxu0 0.0
    %455 = vmatpush1.msra.mxu0 0.0
    %456 = vmatprep.subr.mxu0 0.0
    %457 = vmatpush1.msra.mxu0 0.0
    %458 = vmatprep.subr.mxu0 0.0
    %459 = vmatpush1.msra.mxu0 0.0
    %460 = vmatprep.subr.mxu0 0.0
    %461 = vmatpush1.msra.mxu0 0.0
    %462 = vmatprep.subr.mxu0 0.0
    %463 = vmatpush1.msra.mxu0 0.0
    %464 = vmatprep.subr.mxu0 0.0
    %465 = vmatpush1.msra.mxu0 0.0
    %466 = vmatprep.subr.mxu0 0.0
    %467 = vmatpush1.msra.mxu0 0.0
    %468 = vmatprep.subr.mxu0 0.0
    %469 = vmatpush1.msra.mxu0 0.0
    %470 = vmatprep.subr.mxu0 0.0
    %471 = vmatpush1.msra.mxu0 0.0
    %472 = vmatprep.subr.mxu0 0.0
    %473 = vmatpush1.msra.mxu0 0.0
    %474 = vmatprep.subr.mxu0 0.0
    %475 = vmatpush1.msra.mxu0 0.0
    %476 = vmatprep.subr.mxu0 0.0
    %477 = vmatpush1.msra.mxu0 0.0
    %478 = vmatprep.subr.mxu0 0.0
    %479 = vmatpush1.msra.mxu0 0.0
    %480 = vmatprep.subr.mxu0 0.0
    %481 = vmatpush1.msra.mxu0 0.0
    %482 = vmatprep.subr.mxu0 0.0
    %483 = vmatpush1.msra.mxu0 0.0
    %484 = vmatprep.subr.mxu0 0.0
    %485 = vmatpush1.msra.mxu0 0.0
    %486 = vmatprep.subr.mxu0 0.0
    %487 = vmatpush1.msra.mxu0 0.0
    %488 = vmatprep.subr.mxu0 0.0
    %489 = vmatpush1.msra.mxu0 0.0
    %490 = vmatprep.subr.mxu0 0.0
    %491 = vmatpush1.msra.mxu0 0.0
    %492 = vmatprep.subr.mxu0 0.0
    %493 = vmatpush1.msra.mxu0 0.0
    %494 = vmatprep.subr.mxu0 0.0
    %495 = vmatpush1.msra.mxu0 0.0
    %496 = vmatprep.subr.mxu0 0.0
    %497 = vmatpush1.msra.mxu0 0.0
    %498 = vmatprep.subr.mxu0 0.0
    %499 = vmatpush1.msra.mxu0 0.0
    %500 = vmatprep.subr.mxu0 0.0
    %501 = vmatpush1.msra.mxu0 0.0
    %502 = vmatprep.subr.mxu0 0.0
    %503 = vmatpush1.msra.mxu0 0.0
    %504 = vmatprep.mubr.f32.mxu0 0.0
    %505 = vmatmul.mubr.f32.gmra.mrb[0].mxu0 %v438
    %v506 = vpop.f32.mrb[0].mxu0
    %v507 = vadd.f32 0.0, %v506
    %v508 = vpop.f32.mrb[0].mxu0
    %509 = vdwg.mxu0
    %v510 = vadd.f32 %v437, %v507
    %v511 = vxor.u32 %v510, 2147483648
    %v512 = vmul.f32 %v511, 1.442695
    %v513 = vpow.pop %v512
    %v514 = vadd.f32 %v513, 1.0
    %v515 = vrcp.pop %v514
    %v516 = vmul.f32 1.0, %v515
    %v517 = vmul.f32 %v516, 2.0
    %v518 = vsub.f32 %v517, 1.0
    %v519 = vmul.f32 %v516, %v425
    %521 = vrot.lane.b32.xlu0 %v518, 64
    %v522 = vpop.permute.xlu0 %521
    %v524 = vmul.f32 %v516, %v522
    %526 = vrot.lane.b32.xlu0 %v524, 32
    %v527 = vpop.permute.xlu0 %526
    %v529 = vadd.f32 %v519, %v527
    %v530 = vtanh.pop %v529
    %532 = vrot.lane.b32.xlu0 %v530, 64
    %v533 = vpop.permute.xlu0 %532
    %v535 = vmul.f32 %v516, %v533
    %537 = vrot.lane.b32.xlu0 %v535, 32
    %v538 = vpop.permute.xlu0 %537
    %540 = vst.msk [vmem:[#allocation2 + $0x10] sm:$0xff] %vm228, %v538
    %v541 = vld [vmem:[#allocation4 + $0x18] sm:$0xff]
    %v542 = vsel %vm228, %v538, 0
    %544 = vmatprep.subr.mxu0 0.0
    %545 = vmatpush1.msra.mxu0 %v223
    %546 = vmatprep.subr.mxu0 0.0
    %547 = vmatpush1.msra.mxu0 %v224
    %548 = vmatprep.subr.mxu0 0.0
    %549 = vmatpush1.msra.mxu0 %v225
    %550 = vmatprep.subr.mxu0 0.0
    %551 = vmatpush1.msra.mxu0 %v226
    %552 = vmatprep.subr.mxu0 0.0
    %553 = vmatpush1.msra.mxu0 0.0
    %554 = vmatprep.subr.mxu0 0.0
    %555 = vmatpush1.msra.mxu0 0.0
    %556 = vmatprep.subr.mxu0 0.0
    %557 = vmatpush1.msra.mxu0 0.0
    %558 = vmatprep.subr.mxu0 0.0
    %559 = vmatpush1.msra.mxu0 0.0
    %560 = vmatprep.subr.mxu0 0.0
    %561 = vmatpush1.msra.mxu0 0.0
    %562 = vmatprep.subr.mxu0 0.0
    %563 = vmatpush1.msra.mxu0 0.0
    %564 = vmatprep.subr.mxu0 0.0
    %565 = vmatpush1.msra.mxu0 0.0
    %566 = vmatprep.subr.mxu0 0.0
    %567 = vmatpush1.msra.mxu0 0.0
    %568 = vmatprep.subr.mxu0 0.0
    %569 = vmatpush1.msra.mxu0 0.0
    %570 = vmatprep.subr.mxu0 0.0
    %571 = vmatpush1.msra.mxu0 0.0
    %572 = vmatprep.subr.mxu0 0.0
    %573 = vmatpush1.msra.mxu0 0.0
    %574 = vmatprep.subr.mxu0 0.0
    %575 = vmatpush1.msra.mxu0 0.0
    %576 = vmatprep.subr.mxu0 0.0
    %577 = vmatpush1.msra.mxu0 0.0
    %578 = vmatprep.subr.mxu0 0.0
    %579 = vmatpush1.msra.mxu0 0.0
    %580 = vmatprep.subr.mxu0 0.0
    %581 = vmatpush1.msra.mxu0 0.0
    %582 = vmatprep.subr.mxu0 0.0
    %583 = vmatpush1.msra.mxu0 0.0
    %584 = vmatprep.subr.mxu0 0.0
    %585 = vmatpush1.msra.mxu0 0.0
    %586 = vmatprep.subr.mxu0 0.0
    %587 = vmatpush1.msra.mxu0 0.0
    %588 = vmatprep.subr.mxu0 0.0
    %589 = vmatpush1.msra.mxu0 0.0
    %590 = vmatprep.subr.mxu0 0.0
    %591 = vmatpush1.msra.mxu0 0.0
    %592 = vmatprep.subr.mxu0 0.0
    %593 = vmatpush1.msra.mxu0 0.0
    %594 = vmatprep.subr.mxu0 0.0
    %595 = vmatpush1.msra.mxu0 0.0
    %596 = vmatprep.subr.mxu0 0.0
    %597 = vmatpush1.msra.mxu0 0.0
    %598 = vmatprep.subr.mxu0 0.0
    %599 = vmatpush1.msra.mxu0 0.0
    %600 = vmatprep.subr.mxu0 0.0
    %601 = vmatpush1.msra.mxu0 0.0
    %602 = vmatprep.subr.mxu0 0.0
    %603 = vmatpush1.msra.mxu0 0.0
    %604 = vmatprep.subr.mxu0 0.0
    %605 = vmatpush1.msra.mxu0 0.0
    %606 = vmatprep.subr.mxu0 0.0
    %607 = vmatpush1.msra.mxu0 0.0
    %608 = vmatprep.mubr.f32.mxu0 0.0
    %609 = vmatmul.mubr.f32.gmra.mrb[0].mxu0 %v542
    %v610 = vpop.f32.mrb[0].mxu0
    %v611 = vadd.f32 0.0, %v610
    %v612 = vpop.f32.mrb[0].mxu0
    %613 = vdwg.mxu0
    %v614 = vadd.f32 %v541, %v611
    %v615 = vxor.u32 %v614, 2147483648
    %v616 = vmul.f32 %v615, 1.442695
    %v617 = vpow.pop %v616
    %v618 = vadd.f32 %v617, 1.0
    %v619 = vrcp.pop %v618
    %v620 = vmul.f32 1.0, %v619
    %v621 = vmul.f32 %v620, 2.0
    %v622 = vsub.f32 %v621, 1.0
    %v623 = vmul.f32 %v620, %v529
    %625 = vrot.lane.b32.xlu0 %v622, 64
    %v626 = vpop.permute.xlu0 %625
    %v628 = vmul.f32 %v620, %v626
    %630 = vrot.lane.b32.xlu0 %v628, 32
    %v631 = vpop.permute.xlu0 %630
    %v633 = vadd.f32 %v623, %v631
    %v634 = vtanh.pop %v633
    %636 = vrot.lane.b32.xlu0 %v634, 64
    %v637 = vpop.permute.xlu0 %636
    %v639 = vmul.f32 %v620, %v637
    %641 = vrot.lane.b32.xlu0 %v639, 32
    %v642 = vpop.permute.xlu0 %641
    %644 = vst.msk [vmem:[#allocation2 + $0x18] sm:$0xff] %vm228, %v642
    %v645 = vld [vmem:[#allocation4 + $0x20] sm:$0xff]
    %v646 = vsel %vm228, %v642, 0
    %648 = vmatprep.subr.mxu0 0.0
    %649 = vmatpush1.msra.mxu0 %v223
    %650 = vmatprep.subr.mxu0 0.0
    %651 = vmatpush1.msra.mxu0 %v224
    %652 = vmatprep.subr.mxu0 0.0
    %653 = vmatpush1.msra.mxu0 %v225
    %654 = vmatprep.subr.mxu0 0.0
    %655 = vmatpush1.msra.mxu0 %v226
    %656 = vmatprep.subr.mxu0 0.0
    %657 = vmatpush1.msra.mxu0 0.0
    %658 = vmatprep.subr.mxu0 0.0
    %659 = vmatpush1.msra.mxu0 0.0
    %660 = vmatprep.subr.mxu0 0.0
    %661 = vmatpush1.msra.mxu0 0.0
    %662 = vmatprep.subr.mxu0 0.0
    %663 = vmatpush1.msra.mxu0 0.0
    %664 = vmatprep.subr.mxu0 0.0
    %665 = vmatpush1.msra.mxu0 0.0
    %666 = vmatprep.subr.mxu0 0.0
    %667 = vmatpush1.msra.mxu0 0.0
    %668 = vmatprep.subr.mxu0 0.0
    %669 = vmatpush1.msra.mxu0 0.0
    %670 = vmatprep.subr.mxu0 0.0
    %671 = vmatpush1.msra.mxu0 0.0
    %672 = vmatprep.subr.mxu0 0.0
    %673 = vmatpush1.msra.mxu0 0.0
    %674 = vmatprep.subr.mxu0 0.0
    %675 = vmatpush1.msra.mxu0 0.0
    %676 = vmatprep.subr.mxu0 0.0
    %677 = vmatpush1.msra.mxu0 0.0
    %678 = vmatprep.subr.mxu0 0.0
    %679 = vmatpush1.msra.mxu0 0.0
    %680 = vmatprep.subr.mxu0 0.0
    %681 = vmatpush1.msra.mxu0 0.0
    %682 = vmatprep.subr.mxu0 0.0
    %683 = vmatpush1.msra.mxu0 0.0
    %684 = vmatprep.subr.mxu0 0.0
    %685 = vmatpush1.msra.mxu0 0.0
    %686 = vmatprep.subr.mxu0 0.0
    %687 = vmatpush1.msra.mxu0 0.0
    %688 = vmatprep.subr.mxu0 0.0
    %689 = vmatpush1.msra.mxu0 0.0
    %690 = vmatprep.subr.mxu0 0.0
    %691 = vmatpush1.msra.mxu0 0.0
    %692 = vmatprep.subr.mxu0 0.0
    %693 = vmatpush1.msra.mxu0 0.0
    %694 = vmatprep.subr.mxu0 0.0
    %695 = vmatpush1.msra.mxu0 0.0
    %696 = vmatprep.subr.mxu0 0.0
    %697 = vmatpush1.msra.mxu0 0.0
    %698 = vmatprep.subr.mxu0 0.0
    %699 = vmatpush1.msra.mxu0 0.0
    %700 = vmatprep.subr.mxu0 0.0
    %701 = vmatpush1.msra.mxu0 0.0
    %702 = vmatprep.subr.mxu0 0.0
    %703 = vmatpush1.msra.mxu0 0.0
    %704 = vmatprep.subr.mxu0 0.0
    %705 = vmatpush1.msra.mxu0 0.0
    %706 = vmatprep.subr.mxu0 0.0
    %707 = vmatpush1.msra.mxu0 0.0
    %708 = vmatprep.subr.mxu0 0.0
    %709 = vmatpush1.msra.mxu0 0.0
    %710 = vmatprep.subr.mxu0 0.0
    %711 = vmatpush1.msra.mxu0 0.0
    %712 = vmatprep.mubr.f32.mxu0 0.0
    %713 = vmatmul.mubr.f32.gmra.mrb[0].mxu0 %v646
    %v714 = vpop.f32.mrb[0].mxu0
    %v715 = vadd.f32 0.0, %v714
    %v716 = vpop.f32.mrb[0].mxu0
    %717 = vdwg.mxu0
    %v718 = vadd.f32 %v645, %v715
    %v719 = vxor.u32 %v718, 2147483648
    %v720 = vmul.f32 %v719, 1.442695
    %v721 = vpow.pop %v720
    %v722 = vadd.f32 %v721, 1.0
    %v723 = vrcp.pop %v722
    %v724 = vmul.f32 1.0, %v723
    %v725 = vmul.f32 %v724, 2.0
    %v726 = vsub.f32 %v725, 1.0
    %v727 = vmul.f32 %v724, %v633
    %729 = vrot.lane.b32.xlu0 %v726, 64
    %v730 = vpop.permute.xlu0 %729
    %v732 = vmul.f32 %v724, %v730
    %734 = vrot.lane.b32.xlu0 %v732, 32
    %v735 = vpop.permute.xlu0 %734
    %v737 = vadd.f32 %v727, %v735
    %v738 = vtanh.pop %v737
    %740 = vrot.lane.b32.xlu0 %v738, 64
    %v741 = vpop.permute.xlu0 %740
    %v743 = vmul.f32 %v724, %v741
    %745 = vrot.lane.b32.xlu0 %v743, 32
    %v746 = vpop.permute.xlu0 %745
    %748 = vst.msk [vmem:[#allocation2 + $0x20] sm:$0xff] %vm228, %v746
    %v749 = vld [vmem:[#allocation4 + $0x28] sm:$0xff]
    %v750 = vsel %vm228, %v746, 0
    %752 = vmatprep.subr.mxu0 0.0
    %753 = vmatpush1.msra.mxu0 %v223
    %754 = vmatprep.subr.mxu0 0.0
    %755 = vmatpush1.msra.mxu0 %v224
    %756 = vmatprep.subr.mxu0 0.0
    %757 = vmatpush1.msra.mxu0 %v225
    %758 = vmatprep.subr.mxu0 0.0
    %759 = vmatpush1.msra.mxu0 %v226
    %760 = vmatprep.subr.mxu0 0.0
    %761 = vmatpush1.msra.mxu0 0.0
    %762 = vmatprep.subr.mxu0 0.0
    %763 = vmatpush1.msra.mxu0 0.0
    %764 = vmatprep.subr.mxu0 0.0
    %765 = vmatpush1.msra.mxu0 0.0
    %766 = vmatprep.subr.mxu0 0.0
    %767 = vmatpush1.msra.mxu0 0.0
    %768 = vmatprep.subr.mxu0 0.0
    %769 = vmatpush1.msra.mxu0 0.0
    %770 = vmatprep.subr.mxu0 0.0
    %771 = vmatpush1.msra.mxu0 0.0
    %772 = vmatprep.subr.mxu0 0.0
    %773 = vmatpush1.msra.mxu0 0.0
    %774 = vmatprep.subr.mxu0 0.0
    %775 = vmatpush1.msra.mxu0 0.0
    %776 = vmatprep.subr.mxu0 0.0
    %777 = vmatpush1.msra.mxu0 0.0
    %778 = vmatprep.subr.mxu0 0.0
    %779 = vmatpush1.msra.mxu0 0.0
    %780 = vmatprep.subr.mxu0 0.0
    %781 = vmatpush1.msra.mxu0 0.0
    %782 = vmatprep.subr.mxu0 0.0
    %783 = vmatpush1.msra.mxu0 0.0
    %784 = vmatprep.subr.mxu0 0.0
    %785 = vmatpush1.msra.mxu0 0.0
    %786 = vmatprep.subr.mxu0 0.0
    %787 = vmatpush1.msra.mxu0 0.0
    %788 = vmatprep.subr.mxu0 0.0
    %789 = vmatpush1.msra.mxu0 0.0
    %790 = vmatprep.subr.mxu0 0.0
    %791 = vmatpush1.msra.mxu0 0.0
    %792 = vmatprep.subr.mxu0 0.0
    %793 = vmatpush1.msra.mxu0 0.0
    %794 = vmatprep.subr.mxu0 0.0
    %795 = vmatpush1.msra.mxu0 0.0
    %796 = vmatprep.subr.mxu0 0.0
    %797 = vmatpush1.msra.mxu0 0.0
    %798 = vmatprep.subr.mxu0 0.0
    %799 = vmatpush1.msra.mxu0 0.0
    %800 = vmatprep.subr.mxu0 0.0
    %801 = vmatpush1.msra.mxu0 0.0
    %802 = vmatprep.subr.mxu0 0.0
    %803 = vmatpush1.msra.mxu0 0.0
    %804 = vmatprep.subr.mxu0 0.0
    %805 = vmatpush1.msra.mxu0 0.0
    %806 = vmatprep.subr.mxu0 0.0
    %807 = vmatpush1.msra.mxu0 0.0
    %808 = vmatprep.subr.mxu0 0.0
    %809 = vmatpush1.msra.mxu0 0.0
    %810 = vmatprep.subr.mxu0 0.0
    %811 = vmatpush1.msra.mxu0 0.0
    %812 = vmatprep.subr.mxu0 0.0
    %813 = vmatpush1.msra.mxu0 0.0
    %814 = vmatprep.subr.mxu0 0.0
    %815 = vmatpush1.msra.mxu0 0.0
    %816 = vmatprep.mubr.f32.mxu0 0.0
    %817 = vmatmul.mubr.f32.gmra.mrb[0].mxu0 %v750
    %v818 = vpop.f32.mrb[0].mxu0
    %v819 = vadd.f32 0.0, %v818
    %v820 = vpop.f32.mrb[0].mxu0
    %821 = vdwg.mxu0
    %v822 = vadd.f32 %v749, %v819
    %v823 = vxor.u32 %v822, 2147483648
    %v824 = vmul.f32 %v823, 1.442695
    %v825 = vpow.pop %v824
    %v826 = vadd.f32 %v825, 1.0
    %v827 = vrcp.pop %v826
    %v828 = vmul.f32 1.0, %v827
    %v829 = vmul.f32 %v828, 2.0
    %v830 = vsub.f32 %v829, 1.0
    %v831 = vmul.f32 %v828, %v737
    %833 = vrot.lane.b32.xlu0 %v830, 64
    %v834 = vpop.permute.xlu0 %833
    %v836 = vmul.f32 %v828, %v834
    %838 = vrot.lane.b32.xlu0 %v836, 32
    %v839 = vpop.permute.xlu0 %838
    %v841 = vadd.f32 %v831, %v839
    %v842 = vtanh.pop %v841
    %844 = vrot.lane.b32.xlu0 %v842, 64
    %v845 = vpop.permute.xlu0 %844
    %v847 = vmul.f32 %v828, %v845
    %849 = vrot.lane.b32.xlu0 %v847, 32
    %v850 = vpop.permute.xlu0 %849
    %852 = vst.msk [vmem:[#allocation2 + $0x28] sm:$0xff] %vm228, %v850
    %v853 = vld [vmem:[#allocation4 + $0x30] sm:$0xff]
    %v854 = vsel %vm228, %v850, 0
    %856 = vmatprep.subr.mxu0 0.0
    %857 = vmatpush1.msra.mxu0 %v223
    %858 = vmatprep.subr.mxu0 0.0
    %859 = vmatpush1.msra.mxu0 %v224
    %860 = vmatprep.subr.mxu0 0.0
    %861 = vmatpush1.msra.mxu0 %v225
    %862 = vmatprep.subr.mxu0 0.0
    %863 = vmatpush1.msra.mxu0 %v226
    %864 = vmatprep.subr.mxu0 0.0
    %865 = vmatpush1.msra.mxu0 0.0
    %866 = vmatprep.subr.mxu0 0.0
    %867 = vmatpush1.msra.mxu0 0.0
    %868 = vmatprep.subr.mxu0 0.0
    %869 = vmatpush1.msra.mxu0 0.0
    %870 = vmatprep.subr.mxu0 0.0
    %871 = vmatpush1.msra.mxu0 0.0
    %872 = vmatprep.subr.mxu0 0.0
    %873 = vmatpush1.msra.mxu0 0.0
    %874 = vmatprep.subr.mxu0 0.0
    %875 = vmatpush1.msra.mxu0 0.0
    %876 = vmatprep.subr.mxu0 0.0
    %877 = vmatpush1.msra.mxu0 0.0
    %878 = vmatprep.subr.mxu0 0.0
    %879 = vmatpush1.msra.mxu0 0.0
    %880 = vmatprep.subr.mxu0 0.0
    %881 = vmatpush1.msra.mxu0 0.0
    %882 = vmatprep.subr.mxu0 0.0
    %883 = vmatpush1.msra.mxu0 0.0
    %884 = vmatprep.subr.mxu0 0.0
    %885 = vmatpush1.msra.mxu0 0.0
    %886 = vmatprep.subr.mxu0 0.0
    %887 = vmatpush1.msra.mxu0 0.0
    %888 = vmatprep.subr.mxu0 0.0
    %889 = vmatpush1.msra.mxu0 0.0
    %890 = vmatprep.subr.mxu0 0.0
    %891 = vmatpush1.msra.mxu0 0.0
    %892 = vmatprep.subr.mxu0 0.0
    %893 = vmatpush1.msra.mxu0 0.0
    %894 = vmatprep.subr.mxu0 0.0
    %895 = vmatpush1.msra.mxu0 0.0
    %896 = vmatprep.subr.mxu0 0.0
    %897 = vmatpush1.msra.mxu0 0.0
    %898 = vmatprep.subr.mxu0 0.0
    %899 = vmatpush1.msra.mxu0 0.0
    %900 = vmatprep.subr.mxu0 0.0
    %901 = vmatpush1.msra.mxu0 0.0
    %902 = vmatprep.subr.mxu0 0.0
    %903 = vmatpush1.msra.mxu0 0.0
    %904 = vmatprep.subr.mxu0 0.0
    %905 = vmatpush1.msra.mxu0 0.0
    %906 = vmatprep.subr.mxu0 0.0
    %907 = vmatpush1.msra.mxu0 0.0
    %908 = vmatprep.subr.mxu0 0.0
    %909 = vmatpush1.msra.mxu0 0.0
    %910 = vmatprep.subr.mxu0 0.0
    %911 = vmatpush1.msra.mxu0 0.0
    %912 = vmatprep.subr.mxu0 0.0
    %913 = vmatpush1.msra.mxu0 0.0
    %914 = vmatprep.subr.mxu0 0.0
    %915 = vmatpush1.msra.mxu0 0.0
    %916 = vmatprep.subr.mxu0 0.0
    %917 = vmatpush1.msra.mxu0 0.0
    %918 = vmatprep.subr.mxu0 0.0
    %919 = vmatpush1.msra.mxu0 0.0
    %920 = vmatprep.mubr.f32.mxu0 0.0
    %921 = vmatmul.mubr.f32.gmra.mrb[0].mxu0 %v854
    %v922 = vpop.f32.mrb[0].mxu0
    %v923 = vadd.f32 0.0, %v922
    %v924 = vpop.f32.mrb[0].mxu0
    %925 = vdwg.mxu0
    %v926 = vadd.f32 %v853, %v923
    %v927 = vxor.u32 %v926, 2147483648
    %v928 = vmul.f32 %v927, 1.442695
    %v929 = vpow.pop %v928
    %v930 = vadd.f32 %v929, 1.0
    %v931 = vrcp.pop %v930
    %v932 = vmul.f32 1.0, %v931
    %v933 = vmul.f32 %v932, 2.0
    %v934 = vsub.f32 %v933, 1.0
    %v935 = vmul.f32 %v932, %v841
    %937 = vrot.lane.b32.xlu0 %v934, 64
    %v938 = vpop.permute.xlu0 %937
    %v940 = vmul.f32 %v932, %v938
    %942 = vrot.lane.b32.xlu0 %v940, 32
    %v943 = vpop.permute.xlu0 %942
    %v945 = vadd.f32 %v935, %v943
    %v946 = vtanh.pop %v945
    %948 = vrot.lane.b32.xlu0 %v946, 64
    %v949 = vpop.permute.xlu0 %948
    %v951 = vmul.f32 %v932, %v949
    %953 = vrot.lane.b32.xlu0 %v951, 32
    %v954 = vpop.permute.xlu0 %953
    %956 = vst.msk [vmem:[#allocation2 + $0x30] sm:$0xff] %vm228, %v954
    %v957 = vld [vmem:[#allocation4 + $0x38] sm:$0xff]
    %v958 = vsel %vm228, %v954, 0
    %960 = vmatprep.subr.mxu0 0.0
    %961 = vmatpush1.msra.mxu0 %v223
    %962 = vmatprep.subr.mxu0 0.0
    %963 = vmatpush1.msra.mxu0 %v224
    %964 = vmatprep.subr.mxu0 0.0
    %965 = vmatpush1.msra.mxu0 %v225
    %966 = vmatprep.subr.mxu0 0.0
    %967 = vmatpush1.msra.mxu0 %v226
    %968 = vmatprep.subr.mxu0 0.0
    %969 = vmatpush1.msra.mxu0 0.0
    %970 = vmatprep.subr.mxu0 0.0
    %971 = vmatpush1.msra.mxu0 0.0
    %972 = vmatprep.subr.mxu0 0.0
    %973 = vmatpush1.msra.mxu0 0.0
    %974 = vmatprep.subr.mxu0 0.0
    %975 = vmatpush1.msra.mxu0 0.0
    %976 = vmatprep.subr.mxu0 0.0
    %977 = vmatpush1.msra.mxu0 0.0
    %978 = vmatprep.subr.mxu0 0.0
    %979 = vmatpush1.msra.mxu0 0.0
    %980 = vmatprep.subr.mxu0 0.0
    %981 = vmatpush1.msra.mxu0 0.0
    %982 = vmatprep.subr.mxu0 0.0
    %983 = vmatpush1.msra.mxu0 0.0
    %984 = vmatprep.subr.mxu0 0.0
    %985 = vmatpush1.msra.mxu0 0.0
    %986 = vmatprep.subr.mxu0 0.0
    %987 = vmatpush1.msra.mxu0 0.0
    %988 = vmatprep.subr.mxu0 0.0
    %989 = vmatpush1.msra.mxu0 0.0
    %990 = vmatprep.subr.mxu0 0.0
    %991 = vmatpush1.msra.mxu0 0.0
    %992 = vmatprep.subr.mxu0 0.0
    %993 = vmatpush1.msra.mxu0 0.0
    %994 = vmatprep.subr.mxu0 0.0
    %995 = vmatpush1.msra.mxu0 0.0
    %996 = vmatprep.subr.mxu0 0.0
    %997 = vmatpush1.msra.mxu0 0.0
    %998 = vmatprep.subr.mxu0 0.0
    %999 = vmatpush1.msra.mxu0 0.0
    %1000 = vmatprep.subr.mxu0 0.0
    %1001 = vmatpush1.msra.mxu0 0.0
    %1002 = vmatprep.subr.mxu0 0.0
    %1003 = vmatpush1.msra.mxu0 0.0
    %1004 = vmatprep.subr.mxu0 0.0
    %1005 = vmatpush1.msra.mxu0 0.0
    %1006 = vmatprep.subr.mxu0 0.0
    %1007 = vmatpush1.msra.mxu0 0.0
    %1008 = vmatprep.subr.mxu0 0.0
    %1009 = vmatpush1.msra.mxu0 0.0
    %1010 = vmatprep.subr.mxu0 0.0
    %1011 = vmatpush1.msra.mxu0 0.0
    %1012 = vmatprep.subr.mxu0 0.0
    %1013 = vmatpush1.msra.mxu0 0.0
    %1014 = vmatprep.subr.mxu0 0.0
    %1015 = vmatpush1.msra.mxu0 0.0
    %1016 = vmatprep.subr.mxu0 0.0
    %1017 = vmatpush1.msra.mxu0 0.0
    %1018 = vmatprep.subr.mxu0 0.0
    %1019 = vmatpush1.msra.mxu0 0.0
    %1020 = vmatprep.subr.mxu0 0.0
    %1021 = vmatpush1.msra.mxu0 0.0
    %1022 = vmatprep.subr.mxu0 0.0
    %1023 = vmatpush1.msra.mxu0 0.0
    %1024 = vmatprep.mubr.f32.mxu0 0.0
    %1025 = vmatmul.mubr.f32.gmra.mrb[0].mxu0 %v958
    %v1026 = vpop.f32.mrb[0].mxu0
    %v1027 = vadd.f32 0.0, %v1026
    %v1028 = vpop.f32.mrb[0].mxu0
    %1029 = vdwg.mxu0
    %v1030 = vadd.f32 %v957, %v1027
    %v1031 = vxor.u32 %v1030, 2147483648
    %v1032 = vmul.f32 %v1031, 1.442695
    %v1033 = vpow.pop %v1032
    %v1034 = vadd.f32 %v1033, 1.0
    %v1035 = vrcp.pop %v1034
    %v1036 = vmul.f32 1.0, %v1035
    %v1037 = vmul.f32 %v1036, 2.0
    %v1038 = vsub.f32 %v1037, 1.0
    %v1039 = vmul.f32 %v1036, %v945
    %1041 = vrot.lane.b32.xlu0 %v1038, 64
    %v1042 = vpop.permute.xlu0 %1041
    %v1044 = vmul.f32 %v1036, %v1042
    %1046 = vrot.lane.b32.xlu0 %v1044, 32
    %v1047 = vpop.permute.xlu0 %1046
    %v1049 = vadd.f32 %v1039, %v1047
    %v1050 = vtanh.pop %v1049
    %1052 = vrot.lane.b32.xlu0 %v1050, 64
    %v1053 = vpop.permute.xlu0 %1052
    %v1055 = vmul.f32 %v1036, %v1053
    %1057 = vrot.lane.b32.xlu0 %v1055, 32
    %v1058 = vpop.permute.xlu0 %1057
    %1060 = vst.msk [vmem:[#allocation2 + $0x38] sm:$0xff] %vm228, %v1058
    %v1061 = vld [vmem:[#allocation2] sm:$0xff]
    %v1062 = vld [vmem:[#allocation2 + $0x8] sm:$0xff]
    %v1063 = vld [vmem:[#allocation2 + $0x10] sm:$0xff]
    %v1064 = vld [vmem:[#allocation2 + $0x18] sm:$0xff]
    %v1065 = vld [vmem:[#allocation2 + $0x20] sm:$0xff]
    %v1066 = vld [vmem:[#allocation2 + $0x28] sm:$0xff]
    %v1067 = vld [vmem:[#allocation2 + $0x30] sm:$0xff]
    %v1068 = vld [vmem:[#allocation2 + $0x38] sm:$0xff]
    %v1069 = vld [vmem:[%s4] sm:$0xff]
    %v1070 = vld [vmem:[%s4 + $0x8] sm:$0xff]
    %v1071 = vld [vmem:[%s4 + $0x10] sm:$0xff]
    %v1072 = vld [vmem:[%s4 + $0x18] sm:$0xff]
    %v1073 = vld [vmem:[%s6] sm:$0x1]
    %v1075 = vlaneseq
    %v1076 = vshrl.u32 %v1075, 7
    %v1077 = vsub.s32 0, %v1076
    %v1078 = vrot.slane %v1073, %v1077
    %v1081 = vsel %vm228, %v1061, 0
    %v1084 = vsel %vm228, %v1062, 0
    %v1087 = vsel %vm228, %v1063, 0
    %v1090 = vsel %vm228, %v1064, 0
    %v1093 = vsel %vm228, %v1065, 0
    %v1096 = vsel %vm228, %v1066, 0
    %v1099 = vsel %vm228, %v1067, 0
    %v1102 = vsel %vm228, %v1068, 0
    %1104 = vmatprep.subr.mxu0 0.0
    %1105 = vmatpush1.msra.mxu0 %v1069
    %1106 = vmatprep.subr.mxu0 0.0
    %1107 = vmatpush1.msra.mxu0 %v1070
    %1108 = vmatprep.subr.mxu0 0.0
    %1109 = vmatpush1.msra.mxu0 %v1071
    %1110 = vmatprep.subr.mxu0 0.0
    %1111 = vmatpush1.msra.mxu0 %v1072
    %1112 = vmatprep.subr.mxu0 0.0
    %1113 = vmatpush1.msra.mxu0 0.0
    %1114 = vmatprep.subr.mxu0 0.0
    %1115 = vmatpush1.msra.mxu0 0.0
    %1116 = vmatprep.subr.mxu0 0.0
    %1117 = vmatpush1.msra.mxu0 0.0
    %1118 = vmatprep.subr.mxu0 0.0
    %1119 = vmatpush1.msra.mxu0 0.0
    %1120 = vmatprep.subr.mxu0 0.0
    %1121 = vmatpush1.msra.mxu0 0.0
    %1122 = vmatprep.subr.mxu0 0.0
    %1123 = vmatpush1.msra.mxu0 0.0
    %1124 = vmatprep.subr.mxu0 0.0
    %1125 = vmatpush1.msra.mxu0 0.0
    %1126 = vmatprep.subr.mxu0 0.0
    %1127 = vmatpush1.msra.mxu0 0.0
    %1128 = vmatprep.subr.mxu0 0.0
    %1129 = vmatpush1.msra.mxu0 0.0
    %1130 = vmatprep.subr.mxu0 0.0
    %1131 = vmatpush1.msra.mxu0 0.0
    %1132 = vmatprep.subr.mxu0 0.0
    %1133 = vmatpush1.msra.mxu0 0.0
    %1134 = vmatprep.subr.mxu0 0.0
    %1135 = vmatpush1.msra.mxu0 0.0
    %1136 = vmatprep.subr.mxu0 0.0
    %1137 = vmatpush1.msra.mxu0 0.0
    %1138 = vmatprep.subr.mxu0 0.0
    %1139 = vmatpush1.msra.mxu0 0.0
    %1140 = vmatprep.subr.mxu0 0.0
    %1141 = vmatpush1.msra.mxu0 0.0
    %1142 = vmatprep.subr.mxu0 0.0
    %1143 = vmatpush1.msra.mxu0 0.0
    %1144 = vmatprep.subr.mxu0 0.0
    %1145 = vmatpush1.msra.mxu0 0.0
    %1146 = vmatprep.subr.mxu0 0.0
    %1147 = vmatpush1.msra.mxu0 0.0
    %1148 = vmatprep.subr.mxu0 0.0
    %1149 = vmatpush1.msra.mxu0 0.0
    %1150 = vmatprep.subr.mxu0 0.0
    %1151 = vmatpush1.msra.mxu0 0.0
    %1152 = vmatprep.subr.mxu0 0.0
    %1153 = vmatpush1.msra.mxu0 0.0
    %1154 = vmatprep.subr.mxu0 0.0
    %1155 = vmatpush1.msra.mxu0 0.0
    %1156 = vmatprep.subr.mxu0 0.0
    %1157 = vmatpush1.msra.mxu0 0.0
    %1158 = vmatprep.subr.mxu0 0.0
    %1159 = vmatpush1.msra.mxu0 0.0
    %1160 = vmatprep.subr.mxu0 0.0
    %1161 = vmatpush1.msra.mxu0 0.0
    %1162 = vmatprep.subr.mxu0 0.0
    %1163 = vmatpush1.msra.mxu0 0.0
    %1164 = vmatprep.subr.mxu0 0.0
    %1165 = vmatpush1.msra.mxu0 0.0
    %1166 = vmatprep.subr.mxu0 0.0
    %1167 = vmatpush1.msra.mxu0 0.0
    %1168 = vmatprep.mubr.f32.mxu0 0.0
    %1169 = vmatmul.mubr.f32.gmra.mrb[0].mxu0 %v1081
    %v1170 = vpop.f32.mrb[0].mxu0
    %v1171 = vadd.f32 %v1078, %v1170
    %v1172 = vpop.f32.mrb[0].mxu0
    %1173 = vmatprep.mubr.f32.mxu0 0.0
    %1174 = vmatmul.mubr.f32.gmra.mrb[0].mxu0 %v1084
    %v1175 = vpop.f32.mrb[0].mxu0
    %v1176 = vadd.f32 %v1078, %v1175
    %v1177 = vpop.f32.mrb[0].mxu0
    %1178 = vmatprep.mubr.f32.mxu0 0.0
    %1179 = vmatmul.mubr.f32.gmra.mrb[0].mxu0 %v1087
    %v1180 = vpop.f32.mrb[0].mxu0
    %v1181 = vadd.f32 %v1078, %v1180
    %v1182 = vpop.f32.mrb[0].mxu0
    %1183 = vmatprep.mubr.f32.mxu0 0.0
    %1184 = vmatmul.mubr.f32.gmra.mrb[0].mxu0 %v1090
    %v1185 = vpop.f32.mrb[0].mxu0
    %v1186 = vadd.f32 %v1078, %v1185
    %v1187 = vpop.f32.mrb[0].mxu0
    %1188 = vmatprep.mubr.f32.mxu0 0.0
    %1189 = vmatmul.mubr.f32.gmra.mrb[0].mxu0 %v1093
    %v1190 = vpop.f32.mrb[0].mxu0
    %v1191 = vadd.f32 %v1078, %v1190
    %v1192 = vpop.f32.mrb[0].mxu0
    %1193 = vmatprep.mubr.f32.mxu0 0.0
    %1194 = vmatmul.mubr.f32.gmra.mrb[0].mxu0 %v1096
    %v1195 = vpop.f32.mrb[0].mxu0
    %v1196 = vadd.f32 %v1078, %v1195
    %v1197 = vpop.f32.mrb[0].mxu0
    %1198 = vmatprep.mubr.f32.mxu0 0.0
    %1199 = vmatmul.mubr.f32.gmra.mrb[0].mxu0 %v1099
    %v1200 = vpop.f32.mrb[0].mxu0
    %v1201 = vadd.f32 %v1078, %v1200
    %v1202 = vpop.f32.mrb[0].mxu0
    %1203 = vmatprep.mubr.f32.mxu0 0.0
    %1204 = vmatmul.mubr.f32.gmra.mrb[0].mxu0 %v1102
    %v1205 = vpop.f32.mrb[0].mxu0
    %v1206 = vadd.f32 %v1078, %v1205
    %v1207 = vpop.f32.mrb[0].mxu0
    %1208 = vdwg.mxu0
    %1209 = vst [vmem:[#allocation4] sm:$0xff] %v1171
    %1210 = vst [vmem:[#allocation4 + $0x8] sm:$0xff] %v1176
    %1211 = vst [vmem:[#allocation4 + $0x10] sm:$0xff] %v1181
    %1212 = vst [vmem:[#allocation4 + $0x18] sm:$0xff] %v1186
    %1213 = vst [vmem:[#allocation4 + $0x20] sm:$0xff] %v1191
    %1214 = vst [vmem:[#allocation4 + $0x28] sm:$0xff] %v1196
    %1215 = vst [vmem:[#allocation4 + $0x30] sm:$0xff] %v1201
    %1216 = vst [vmem:[#allocation4 + $0x38] sm:$0xff] %v1206
    %v1217 = vld [vmem:[%s5] sm:$0xff]
    %v1218 = vld [vmem:[%s5 + $0x8] sm:$0xff]
    %v1219 = vld [vmem:[%s5 + $0x10] sm:$0xff]
    %v1220 = vld [vmem:[%s5 + $0x18] sm:$0xff]
    %v1221 = vld [vmem:[#allocation4] sm:$0xff]
    %1222 = vmatprep.subr.mxu0 0.0
    %1223 = vmatpush1.msra.mxu0 %v1217
    %1224 = vmatprep.subr.mxu0 0.0
    %1225 = vmatpush1.msra.mxu0 %v1218
    %1226 = vmatprep.subr.mxu0 0.0
    %1227 = vmatpush1.msra.mxu0 %v1219
    %1228 = vmatprep.subr.mxu0 0.0
    %1229 = vmatpush1.msra.mxu0 %v1220
    %1230 = vmatprep.subr.mxu0 0.0
    %1231 = vmatpush1.msra.mxu0 0.0
    %1232 = vmatprep.subr.mxu0 0.0
    %1233 = vmatpush1.msra.mxu0 0.0
    %1234 = vmatprep.subr.mxu0 0.0
    %1235 = vmatpush1.msra.mxu0 0.0
    %1236 = vmatprep.subr.mxu0 0.0
    %1237 = vmatpush1.msra.mxu0 0.0
    %1238 = vmatprep.subr.mxu0 0.0
    %1239 = vmatpush1.msra.mxu0 0.0
    %1240 = vmatprep.subr.mxu0 0.0
    %1241 = vmatpush1.msra.mxu0 0.0
    %1242 = vmatprep.subr.mxu0 0.0
    %1243 = vmatpush1.msra.mxu0 0.0
    %1244 = vmatprep.subr.mxu0 0.0
    %1245 = vmatpush1.msra.mxu0 0.0
    %1246 = vmatprep.subr.mxu0 0.0
    %1247 = vmatpush1.msra.mxu0 0.0
    %1248 = vmatprep.subr.mxu0 0.0
    %1249 = vmatpush1.msra.mxu0 0.0
    %1250 = vmatprep.subr.mxu0 0.0
    %1251 = vmatpush1.msra.mxu0 0.0
    %1252 = vmatprep.subr.mxu0 0.0
    %1253 = vmatpush1.msra.mxu0 0.0
    %1254 = vmatprep.subr.mxu0 0.0
    %1255 = vmatpush1.msra.mxu0 0.0
    %1256 = vmatprep.subr.mxu0 0.0
    %1257 = vmatpush1.msra.mxu0 0.0
    %1258 = vmatprep.subr.mxu0 0.0
    %1259 = vmatpush1.msra.mxu0 0.0
    %1260 = vmatprep.subr.mxu0 0.0
    %1261 = vmatpush1.msra.mxu0 0.0
    %1262 = vmatprep.subr.mxu0 0.0
    %1263 = vmatpush1.msra.mxu0 0.0
    %1264 = vmatprep.subr.mxu0 0.0
    %1265 = vmatpush1.msra.mxu0 0.0
    %1266 = vmatprep.subr.mxu0 0.0
    %1267 = vmatpush1.msra.mxu0 0.0
    %1268 = vmatprep.subr.mxu0 0.0
    %1269 = vmatpush1.msra.mxu0 0.0
    %1270 = vmatprep.subr.mxu0 0.0
    %1271 = vmatpush1.msra.mxu0 0.0
    %1272 = vmatprep.subr.mxu0 0.0
    %1273 = vmatpush1.msra.mxu0 0.0
    %1274 = vmatprep.subr.mxu0 0.0
    %1275 = vmatpush1.msra.mxu0 0.0
    %1276 = vmatprep.subr.mxu0 0.0
    %1277 = vmatpush1.msra.mxu0 0.0
    %1278 = vmatprep.subr.mxu0 0.0
    %1279 = vmatpush1.msra.mxu0 0.0
    %1280 = vmatprep.subr.mxu0 0.0
    %1281 = vmatpush1.msra.mxu0 0.0
    %1282 = vmatprep.subr.mxu0 0.0
    %1283 = vmatpush1.msra.mxu0 0.0
    %1284 = vmatprep.subr.mxu0 0.0
    %1285 = vmatpush1.msra.mxu0 0.0
    %1286 = vmatprep.mubr.f32.mxu0 0.0
    %1287 = vmatmul.mubr.f32.gmra.mrb[0].mxu0 %v230
    %v1288 = vpop.f32.mrb[0].mxu0
    %v1289 = vadd.f32 0.0, %v1288
    %v1290 = vpop.f32.mrb[0].mxu0
    %1291 = vdwg.mxu0
    %v1292 = vadd.f32 %v1221, %v1289
    %v1293 = vxor.u32 %v1292, 2147483648
    %v1294 = vmul.f32 %v1293, 1.442695
    %v1295 = vpow.pop %v1294
    %v1296 = vadd.f32 %v1295, 1.0
    %v1297 = vrcp.pop %v1296
    %v1298 = vmul.f32 1.0, %v1297
    %v1299 = vmul.f32 %v1298, 2.0
    %v1300 = vsub.f32 %v1299, 1.0
    %v1301 = vmul.f32 %v1298, 0.0
    %1303 = vrot.lane.b32.xlu0 %v1300, 64
    %v1304 = vpop.permute.xlu0 %1303
    %v1306 = vmul.f32 %v1298, %v1304
    %1308 = vrot.lane.b32.xlu0 %v1306, 32
    %v1309 = vpop.permute.xlu0 %1308
    %v1311 = vadd.f32 %v1301, %v1309
    %v1312 = vtanh.pop %v1311
    %1314 = vrot.lane.b32.xlu0 %v1312, 64
    %v1315 = vpop.permute.xlu0 %1314
    %v1317 = vmul.f32 %v1298, %v1315
    %1319 = vrot.lane.b32.xlu0 %v1317, 32
    %v1320 = vpop.permute.xlu0 %1319
    %1322 = vst.msk [vmem:[#allocation3] sm:$0xff] %vm228, %v1320
    %v1323 = vld [vmem:[#allocation4 + $0x8] sm:$0xff]
    %v1324 = vsel %vm228, %v1320, 0
    %1326 = vmatprep.subr.mxu0 0.0
    %1327 = vmatpush1.msra.mxu0 %v1217
    %1328 = vmatprep.subr.mxu0 0.0
    %1329 = vmatpush1.msra.mxu0 %v1218
    %1330 = vmatprep.subr.mxu0 0.0
    %1331 = vmatpush1.msra.mxu0 %v1219
    %1332 = vmatprep.subr.mxu0 0.0
    %1333 = vmatpush1.msra.mxu0 %v1220
    %1334 = vmatprep.subr.mxu0 0.0
    %1335 = vmatpush1.msra.mxu0 0.0
    %1336 = vmatprep.subr.mxu0 0.0
    %1337 = vmatpush1.msra.mxu0 0.0
    %1338 = vmatprep.subr.mxu0 0.0
    %1339 = vmatpush1.msra.mxu0 0.0
    %1340 = vmatprep.subr.mxu0 0.0
    %1341 = vmatpush1.msra.mxu0 0.0
    %1342 = vmatprep.subr.mxu0 0.0
    %1343 = vmatpush1.msra.mxu0 0.0
    %1344 = vmatprep.subr.mxu0 0.0
    %1345 = vmatpush1.msra.mxu0 0.0
    %1346 = vmatprep.subr.mxu0 0.0
    %1347 = vmatpush1.msra.mxu0 0.0
    %1348 = vmatprep.subr.mxu0 0.0
    %1349 = vmatpush1.msra.mxu0 0.0
    %1350 = vmatprep.subr.mxu0 0.0
    %1351 = vmatpush1.msra.mxu0 0.0
    %1352 = vmatprep.subr.mxu0 0.0
    %1353 = vmatpush1.msra.mxu0 0.0
    %1354 = vmatprep.subr.mxu0 0.0
    %1355 = vmatpush1.msra.mxu0 0.0
    %1356 = vmatprep.subr.mxu0 0.0
    %1357 = vmatpush1.msra.mxu0 0.0
    %1358 = vmatprep.subr.mxu0 0.0
    %1359 = vmatpush1.msra.mxu0 0.0
    %1360 = vmatprep.subr.mxu0 0.0
    %1361 = vmatpush1.msra.mxu0 0.0
    %1362 = vmatprep.subr.mxu0 0.0
    %1363 = vmatpush1.msra.mxu0 0.0
    %1364 = vmatprep.subr.mxu0 0.0
    %1365 = vmatpush1.msra.mxu0 0.0
    %1366 = vmatprep.subr.mxu0 0.0
    %1367 = vmatpush1.msra.mxu0 0.0
    %1368 = vmatprep.subr.mxu0 0.0
    %1369 = vmatpush1.msra.mxu0 0.0
    %1370 = vmatprep.subr.mxu0 0.0
    %1371 = vmatpush1.msra.mxu0 0.0
    %1372 = vmatprep.subr.mxu0 0.0
    %1373 = vmatpush1.msra.mxu0 0.0
    %1374 = vmatprep.subr.mxu0 0.0
    %1375 = vmatpush1.msra.mxu0 0.0
    %1376 = vmatprep.subr.mxu0 0.0
    %1377 = vmatpush1.msra.mxu0 0.0
    %1378 = vmatprep.subr.mxu0 0.0
    %1379 = vmatpush1.msra.mxu0 0.0
    %1380 = vmatprep.subr.mxu0 0.0
    %1381 = vmatpush1.msra.mxu0 0.0
    %1382 = vmatprep.subr.mxu0 0.0
    %1383 = vmatpush1.msra.mxu0 0.0
    %1384 = vmatprep.subr.mxu0 0.0
    %1385 = vmatpush1.msra.mxu0 0.0
    %1386 = vmatprep.subr.mxu0 0.0
    %1387 = vmatpush1.msra.mxu0 0.0
    %1388 = vmatprep.subr.mxu0 0.0
    %1389 = vmatpush1.msra.mxu0 0.0
    %1390 = vmatprep.mubr.f32.mxu0 0.0
    %1391 = vmatmul.mubr.f32.gmra.mrb[0].mxu0 %v1324
    %v1392 = vpop.f32.mrb[0].mxu0
    %v1393 = vadd.f32 0.0, %v1392
    %v1394 = vpop.f32.mrb[0].mxu0
    %1395 = vdwg.mxu0
    %v1396 = vadd.f32 %v1323, %v1393
    %v1397 = vxor.u32 %v1396, 2147483648
    %v1398 = vmul.f32 %v1397, 1.442695
    %v1399 = vpow.pop %v1398
    %v1400 = vadd.f32 %v1399, 1.0
    %v1401 = vrcp.pop %v1400
    %v1402 = vmul.f32 1.0, %v1401
    %v1403 = vmul.f32 %v1402, 2.0
    %v1404 = vsub.f32 %v1403, 1.0
    %v1405 = vmul.f32 %v1402, %v1311
    %1407 = vrot.lane.b32.xlu0 %v1404, 64
    %v1408 = vpop.permute.xlu0 %1407
    %v1410 = vmul.f32 %v1402, %v1408
    %1412 = vrot.lane.b32.xlu0 %v1410, 32
    %v1413 = vpop.permute.xlu0 %1412
    %v1415 = vadd.f32 %v1405, %v1413
    %v1416 = vtanh.pop %v1415
    %1418 = vrot.lane.b32.xlu0 %v1416, 64
    %v1419 = vpop.permute.xlu0 %1418
    %v1421 = vmul.f32 %v1402, %v1419
    %1423 = vrot.lane.b32.xlu0 %v1421, 32
    %v1424 = vpop.permute.xlu0 %1423
    %1426 = vst.msk [vmem:[#allocation3 + $0x8] sm:$0xff] %vm228, %v1424
    %v1427 = vld [vmem:[#allocation4 + $0x10] sm:$0xff]
    %v1428 = vsel %vm228, %v1424, 0
    %1430 = vmatprep.subr.mxu0 0.0
    %1431 = vmatpush1.msra.mxu0 %v1217
    %1432 = vmatprep.subr.mxu0 0.0
    %1433 = vmatpush1.msra.mxu0 %v1218
    %1434 = vmatprep.subr.mxu0 0.0
    %1435 = vmatpush1.msra.mxu0 %v1219
    %1436 = vmatprep.subr.mxu0 0.0
    %1437 = vmatpush1.msra.mxu0 %v1220
    %1438 = vmatprep.subr.mxu0 0.0
    %1439 = vmatpush1.msra.mxu0 0.0
    %1440 = vmatprep.subr.mxu0 0.0
    %1441 = vmatpush1.msra.mxu0 0.0
    %1442 = vmatprep.subr.mxu0 0.0
    %1443 = vmatpush1.msra.mxu0 0.0
    %1444 = vmatprep.subr.mxu0 0.0
    %1445 = vmatpush1.msra.mxu0 0.0
    %1446 = vmatprep.subr.mxu0 0.0
    %1447 = vmatpush1.msra.mxu0 0.0
    %1448 = vmatprep.subr.mxu0 0.0
    %1449 = vmatpush1.msra.mxu0 0.0
    %1450 = vmatprep.subr.mxu0 0.0
    %1451 = vmatpush1.msra.mxu0 0.0
    %1452 = vmatprep.subr.mxu0 0.0
    %1453 = vmatpush1.msra.mxu0 0.0
    %1454 = vmatprep.subr.mxu0 0.0
    %1455 = vmatpush1.msra.mxu0 0.0
    %1456 = vmatprep.subr.mxu0 0.0
    %1457 = vmatpush1.msra.mxu0 0.0
    %1458 = vmatprep.subr.mxu0 0.0
    %1459 = vmatpush1.msra.mxu0 0.0
    %1460 = vmatprep.subr.mxu0 0.0
    %1461 = vmatpush1.msra.mxu0 0.0
    %1462 = vmatprep.subr.mxu0 0.0
    %1463 = vmatpush1.msra.mxu0 0.0
    %1464 = vmatprep.subr.mxu0 0.0
    %1465 = vmatpush1.msra.mxu0 0.0
    %1466 = vmatprep.subr.mxu0 0.0
    %1467 = vmatpush1.msra.mxu0 0.0
    %1468 = vmatprep.subr.mxu0 0.0
    %1469 = vmatpush1.msra.mxu0 0.0
    %1470 = vmatprep.subr.mxu0 0.0
    %1471 = vmatpush1.msra.mxu0 0.0
    %1472 = vmatprep.subr.mxu0 0.0
    %1473 = vmatpush1.msra.mxu0 0.0
    %1474 = vmatprep.subr.mxu0 0.0
    %1475 = vmatpush1.msra.mxu0 0.0
    %1476 = vmatprep.subr.mxu0 0.0
    %1477 = vmatpush1.msra.mxu0 0.0
    %1478 = vmatprep.subr.mxu0 0.0
    %1479 = vmatpush1.msra.mxu0 0.0
    %1480 = vmatprep.subr.mxu0 0.0
    %1481 = vmatpush1.msra.mxu0 0.0
    %1482 = vmatprep.subr.mxu0 0.0
    %1483 = vmatpush1.msra.mxu0 0.0
    %1484 = vmatprep.subr.mxu0 0.0
    %1485 = vmatpush1.msra.mxu0 0.0
    %1486 = vmatprep.subr.mxu0 0.0
    %1487 = vmatpush1.msra.mxu0 0.0
    %1488 = vmatprep.subr.mxu0 0.0
    %1489 = vmatpush1.msra.mxu0 0.0
    %1490 = vmatprep.subr.mxu0 0.0
    %1491 = vmatpush1.msra.mxu0 0.0
    %1492 = vmatprep.subr.mxu0 0.0
    %1493 = vmatpush1.msra.mxu0 0.0
    %1494 = vmatprep.mubr.f32.mxu0 0.0
    %1495 = vmatmul.mubr.f32.gmra.mrb[0].mxu0 %v1428
    %v1496 = vpop.f32.mrb[0].mxu0
    %v1497 = vadd.f32 0.0, %v1496
    %v1498 = vpop.f32.mrb[0].mxu0
    %1499 = vdwg.mxu0
    %v1500 = vadd.f32 %v1427, %v1497
    %v1501 = vxor.u32 %v1500, 2147483648
    %v1502 = vmul.f32 %v1501, 1.442695
    %v1503 = vpow.pop %v1502
    %v1504 = vadd.f32 %v1503, 1.0
    %v1505 = vrcp.pop %v1504
    %v1506 = vmul.f32 1.0, %v1505
    %v1507 = vmul.f32 %v1506, 2.0
    %v1508 = vsub.f32 %v1507, 1.0
    %v1509 = vmul.f32 %v1506, %v1415
    %1511 = vrot.lane.b32.xlu0 %v1508, 64
    %v1512 = vpop.permute.xlu0 %1511
    %v1514 = vmul.f32 %v1506, %v1512
    %1516 = vrot.lane.b32.xlu0 %v1514, 32
    %v1517 = vpop.permute.xlu0 %1516
    %v1519 = vadd.f32 %v1509, %v1517
    %v1520 = vtanh.pop %v1519
    %1522 = vrot.lane.b32.xlu0 %v1520, 64
    %v1523 = vpop.permute.xlu0 %1522
    %v1525 = vmul.f32 %v1506, %v1523
    %1527 = vrot.lane.b32.xlu0 %v1525, 32
    %v1528 = vpop.permute.xlu0 %1527
    %1530 = vst.msk [vmem:[#allocation3 + $0x10] sm:$0xff] %vm228, %v1528
    %v1531 = vld [vmem:[#allocation4 + $0x18] sm:$0xff]
    %v1532 = vsel %vm228, %v1528, 0
    %1534 = vmatprep.subr.mxu0 0.0
    %1535 = vmatpush1.msra.mxu0 %v1217
    %1536 = vmatprep.subr.mxu0 0.0
    %1537 = vmatpush1.msra.mxu0 %v1218
    %1538 = vmatprep.subr.mxu0 0.0
    %1539 = vmatpush1.msra.mxu0 %v1219
    %1540 = vmatprep.subr.mxu0 0.0
    %1541 = vmatpush1.msra.mxu0 %v1220
    %1542 = vmatprep.subr.mxu0 0.0
    %1543 = vmatpush1.msra.mxu0 0.0
    %1544 = vmatprep.subr.mxu0 0.0
    %1545 = vmatpush1.msra.mxu0 0.0
    %1546 = vmatprep.subr.mxu0 0.0
    %1547 = vmatpush1.msra.mxu0 0.0
    %1548 = vmatprep.subr.mxu0 0.0
    %1549 = vmatpush1.msra.mxu0 0.0
    %1550 = vmatprep.subr.mxu0 0.0
    %1551 = vmatpush1.msra.mxu0 0.0
    %1552 = vmatprep.subr.mxu0 0.0
    %1553 = vmatpush1.msra.mxu0 0.0
    %1554 = vmatprep.subr.mxu0 0.0
    %1555 = vmatpush1.msra.mxu0 0.0
    %1556 = vmatprep.subr.mxu0 0.0
    %1557 = vmatpush1.msra.mxu0 0.0
    %1558 = vmatprep.subr.mxu0 0.0
    %1559 = vmatpush1.msra.mxu0 0.0
    %1560 = vmatprep.subr.mxu0 0.0
    %1561 = vmatpush1.msra.mxu0 0.0
    %1562 = vmatprep.subr.mxu0 0.0
    %1563 = vmatpush1.msra.mxu0 0.0
    %1564 = vmatprep.subr.mxu0 0.0
    %1565 = vmatpush1.msra.mxu0 0.0
    %1566 = vmatprep.subr.mxu0 0.0
    %1567 = vmatpush1.msra.mxu0 0.0
    %1568 = vmatprep.subr.mxu0 0.0
    %1569 = vmatpush1.msra.mxu0 0.0
    %1570 = vmatprep.subr.mxu0 0.0
    %1571 = vmatpush1.msra.mxu0 0.0
    %1572 = vmatprep.subr.mxu0 0.0
    %1573 = vmatpush1.msra.mxu0 0.0
    %1574 = vmatprep.subr.mxu0 0.0
    %1575 = vmatpush1.msra.mxu0 0.0
    %1576 = vmatprep.subr.mxu0 0.0
    %1577 = vmatpush1.msra.mxu0 0.0
    %1578 = vmatprep.subr.mxu0 0.0
    %1579 = vmatpush1.msra.mxu0 0.0
    %1580 = vmatprep.subr.mxu0 0.0
    %1581 = vmatpush1.msra.mxu0 0.0
    %1582 = vmatprep.subr.mxu0 0.0
    %1583 = vmatpush1.msra.mxu0 0.0
    %1584 = vmatprep.subr.mxu0 0.0
    %1585 = vmatpush1.msra.mxu0 0.0
    %1586 = vmatprep.subr.mxu0 0.0
    %1587 = vmatpush1.msra.mxu0 0.0
    %1588 = vmatprep.subr.mxu0 0.0
    %1589 = vmatpush1.msra.mxu0 0.0
    %1590 = vmatprep.subr.mxu0 0.0
    %1591 = vmatpush1.msra.mxu0 0.0
    %1592 = vmatprep.subr.mxu0 0.0
    %1593 = vmatpush1.msra.mxu0 0.0
    %1594 = vmatprep.subr.mxu0 0.0
    %1595 = vmatpush1.msra.mxu0 0.0
    %1596 = vmatprep.subr.mxu0 0.0
    %1597 = vmatpush1.msra.mxu0 0.0
    %1598 = vmatprep.mubr.f32.mxu0 0.0
    %1599 = vmatmul.mubr.f32.gmra.mrb[0].mxu0 %v1532
    %v1600 = vpop.f32.mrb[0].mxu0
    %v1601 = vadd.f32 0.0, %v1600
    %v1602 = vpop.f32.mrb[0].mxu0
    %1603 = vdwg.mxu0
    %v1604 = vadd.f32 %v1531, %v1601
    %v1605 = vxor.u32 %v1604, 2147483648
    %v1606 = vmul.f32 %v1605, 1.442695
    %v1607 = vpow.pop %v1606
    %v1608 = vadd.f32 %v1607, 1.0
    %v1609 = vrcp.pop %v1608
    %v1610 = vmul.f32 1.0, %v1609
    %v1611 = vmul.f32 %v1610, 2.0
    %v1612 = vsub.f32 %v1611, 1.0
    %v1613 = vmul.f32 %v1610, %v1519
    %1615 = vrot.lane.b32.xlu0 %v1612, 64
    %v1616 = vpop.permute.xlu0 %1615
    %v1618 = vmul.f32 %v1610, %v1616
    %1620 = vrot.lane.b32.xlu0 %v1618, 32
    %v1621 = vpop.permute.xlu0 %1620
    %v1623 = vadd.f32 %v1613, %v1621
    %v1624 = vtanh.pop %v1623
    %1626 = vrot.lane.b32.xlu0 %v1624, 64
    %v1627 = vpop.permute.xlu0 %1626
    %v1629 = vmul.f32 %v1610, %v1627
    %1631 = vrot.lane.b32.xlu0 %v1629, 32
    %v1632 = vpop.permute.xlu0 %1631
    %1634 = vst.msk [vmem:[#allocation3 + $0x18] sm:$0xff] %vm228, %v1632
    %v1635 = vld [vmem:[#allocation4 + $0x20] sm:$0xff]
    %v1636 = vsel %vm228, %v1632, 0
    %1638 = vmatprep.subr.mxu0 0.0
    %1639 = vmatpush1.msra.mxu0 %v1217
    %1640 = vmatprep.subr.mxu0 0.0
    %1641 = vmatpush1.msra.mxu0 %v1218
    %1642 = vmatprep.subr.mxu0 0.0
    %1643 = vmatpush1.msra.mxu0 %v1219
    %1644 = vmatprep.subr.mxu0 0.0
    %1645 = vmatpush1.msra.mxu0 %v1220
    %1646 = vmatprep.subr.mxu0 0.0
    %1647 = vmatpush1.msra.mxu0 0.0
    %1648 = vmatprep.subr.mxu0 0.0
    %1649 = vmatpush1.msra.mxu0 0.0
    %1650 = vmatprep.subr.mxu0 0.0
    %1651 = vmatpush1.msra.mxu0 0.0
    %1652 = vmatprep.subr.mxu0 0.0
    %1653 = vmatpush1.msra.mxu0 0.0
    %1654 = vmatprep.subr.mxu0 0.0
    %1655 = vmatpush1.msra.mxu0 0.0
    %1656 = vmatprep.subr.mxu0 0.0
    %1657 = vmatpush1.msra.mxu0 0.0
    %1658 = vmatprep.subr.mxu0 0.0
    %1659 = vmatpush1.msra.mxu0 0.0
    %1660 = vmatprep.subr.mxu0 0.0
    %1661 = vmatpush1.msra.mxu0 0.0
    %1662 = vmatprep.subr.mxu0 0.0
    %1663 = vmatpush1.msra.mxu0 0.0
    %1664 = vmatprep.subr.mxu0 0.0
    %1665 = vmatpush1.msra.mxu0 0.0
    %1666 = vmatprep.subr.mxu0 0.0
    %1667 = vmatpush1.msra.mxu0 0.0
    %1668 = vmatprep.subr.mxu0 0.0
    %1669 = vmatpush1.msra.mxu0 0.0
    %1670 = vmatprep.subr.mxu0 0.0
    %1671 = vmatpush1.msra.mxu0 0.0
    %1672 = vmatprep.subr.mxu0 0.0
    %1673 = vmatpush1.msra.mxu0 0.0
    %1674 = vmatprep.subr.mxu0 0.0
    %1675 = vmatpush1.msra.mxu0 0.0
    %1676 = vmatprep.subr.mxu0 0.0
    %1677 = vmatpush1.msra.mxu0 0.0
    %1678 = vmatprep.subr.mxu0 0.0
    %1679 = vmatpush1.msra.mxu0 0.0
    %1680 = vmatprep.subr.mxu0 0.0
    %1681 = vmatpush1.msra.mxu0 0.0
    %1682 = vmatprep.subr.mxu0 0.0
    %1683 = vmatpush1.msra.mxu0 0.0
    %1684 = vmatprep.subr.mxu0 0.0
    %1685 = vmatpush1.msra.mxu0 0.0
    %1686 = vmatprep.subr.mxu0 0.0
    %1687 = vmatpush1.msra.mxu0 0.0
    %1688 = vmatprep.subr.mxu0 0.0
    %1689 = vmatpush1.msra.mxu0 0.0
    %1690 = vmatprep.subr.mxu0 0.0
    %1691 = vmatpush1.msra.mxu0 0.0
    %1692 = vmatprep.subr.mxu0 0.0
    %1693 = vmatpush1.msra.mxu0 0.0
    %1694 = vmatprep.subr.mxu0 0.0
    %1695 = vmatpush1.msra.mxu0 0.0
    %1696 = vmatprep.subr.mxu0 0.0
    %1697 = vmatpush1.msra.mxu0 0.0
    %1698 = vmatprep.subr.mxu0 0.0
    %1699 = vmatpush1.msra.mxu0 0.0
    %1700 = vmatprep.subr.mxu0 0.0
    %1701 = vmatpush1.msra.mxu0 0.0
    %1702 = vmatprep.mubr.f32.mxu0 0.0
    %1703 = vmatmul.mubr.f32.gmra.mrb[0].mxu0 %v1636
    %v1704 = vpop.f32.mrb[0].mxu0
    %v1705 = vadd.f32 0.0, %v1704
    %v1706 = vpop.f32.mrb[0].mxu0
    %1707 = vdwg.mxu0
    %v1708 = vadd.f32 %v1635, %v1705
    %v1709 = vxor.u32 %v1708, 2147483648
    %v1710 = vmul.f32 %v1709, 1.442695
    %v1711 = vpow.pop %v1710
    %v1712 = vadd.f32 %v1711, 1.0
    %v1713 = vrcp.pop %v1712
    %v1714 = vmul.f32 1.0, %v1713
    %v1715 = vmul.f32 %v1714, 2.0
    %v1716 = vsub.f32 %v1715, 1.0
    %v1717 = vmul.f32 %v1714, %v1623
    %1719 = vrot.lane.b32.xlu0 %v1716, 64
    %v1720 = vpop.permute.xlu0 %1719
    %v1722 = vmul.f32 %v1714, %v1720
    %1724 = vrot.lane.b32.xlu0 %v1722, 32
    %v1725 = vpop.permute.xlu0 %1724
    %v1727 = vadd.f32 %v1717, %v1725
    %v1728 = vtanh.pop %v1727
    %1730 = vrot.lane.b32.xlu0 %v1728, 64
    %v1731 = vpop.permute.xlu0 %1730
    %v1733 = vmul.f32 %v1714, %v1731
    %1735 = vrot.lane.b32.xlu0 %v1733, 32
    %v1736 = vpop.permute.xlu0 %1735
    %1738 = vst.msk [vmem:[#allocation3 + $0x20] sm:$0xff] %vm228, %v1736
    %v1739 = vld [vmem:[#allocation4 + $0x28] sm:$0xff]
    %v1740 = vsel %vm228, %v1736, 0
    %1742 = vmatprep.subr.mxu0 0.0
    %1743 = vmatpush1.msra.mxu0 %v1217
    %1744 = vmatprep.subr.mxu0 0.0
    %1745 = vmatpush1.msra.mxu0 %v1218
    %1746 = vmatprep.subr.mxu0 0.0
    %1747 = vmatpush1.msra.mxu0 %v1219
    %1748 = vmatprep.subr.mxu0 0.0
    %1749 = vmatpush1.msra.mxu0 %v1220
    %1750 = vmatprep.subr.mxu0 0.0
    %1751 = vmatpush1.msra.mxu0 0.0
    %1752 = vmatprep.subr.mxu0 0.0
    %1753 = vmatpush1.msra.mxu0 0.0
    %1754 = vmatprep.subr.mxu0 0.0
    %1755 = vmatpush1.msra.mxu0 0.0
    %1756 = vmatprep.subr.mxu0 0.0
    %1757 = vmatpush1.msra.mxu0 0.0
    %1758 = vmatprep.subr.mxu0 0.0
    %1759 = vmatpush1.msra.mxu0 0.0
    %1760 = vmatprep.subr.mxu0 0.0
    %1761 = vmatpush1.msra.mxu0 0.0
    %1762 = vmatprep.subr.mxu0 0.0
    %1763 = vmatpush1.msra.mxu0 0.0
    %1764 = vmatprep.subr.mxu0 0.0
    %1765 = vmatpush1.msra.mxu0 0.0
    %1766 = vmatprep.subr.mxu0 0.0
    %1767 = vmatpush1.msra.mxu0 0.0
    %1768 = vmatprep.subr.mxu0 0.0
    %1769 = vmatpush1.msra.mxu0 0.0
    %1770 = vmatprep.subr.mxu0 0.0
    %1771 = vmatpush1.msra.mxu0 0.0
    %1772 = vmatprep.subr.mxu0 0.0
    %1773 = vmatpush1.msra.mxu0 0.0
    %1774 = vmatprep.subr.mxu0 0.0
    %1775 = vmatpush1.msra.mxu0 0.0
    %1776 = vmatprep.subr.mxu0 0.0
    %1777 = vmatpush1.msra.mxu0 0.0
    %1778 = vmatprep.subr.mxu0 0.0
    %1779 = vmatpush1.msra.mxu0 0.0
    %1780 = vmatprep.subr.mxu0 0.0
    %1781 = vmatpush1.msra.mxu0 0.0
    %1782 = vmatprep.subr.mxu0 0.0
    %1783 = vmatpush1.msra.mxu0 0.0
    %1784 = vmatprep.subr.mxu0 0.0
    %1785 = vmatpush1.msra.mxu0 0.0
    %1786 = vmatprep.subr.mxu0 0.0
    %1787 = vmatpush1.msra.mxu0 0.0
    %1788 = vmatprep.subr.mxu0 0.0
    %1789 = vmatpush1.msra.mxu0 0.0
    %1790 = vmatprep.subr.mxu0 0.0
    %1791 = vmatpush1.msra.mxu0 0.0
    %1792 = vmatprep.subr.mxu0 0.0
    %1793 = vmatpush1.msra.mxu0 0.0
    %1794 = vmatprep.subr.mxu0 0.0
    %1795 = vmatpush1.msra.mxu0 0.0
    %1796 = vmatprep.subr.mxu0 0.0
    %1797 = vmatpush1.msra.mxu0 0.0
    %1798 = vmatprep.subr.mxu0 0.0
    %1799 = vmatpush1.msra.mxu0 0.0
    %1800 = vmatprep.subr.mxu0 0.0
    %1801 = vmatpush1.msra.mxu0 0.0
    %1802 = vmatprep.subr.mxu0 0.0
    %1803 = vmatpush1.msra.mxu0 0.0
    %1804 = vmatprep.subr.mxu0 0.0
    %1805 = vmatpush1.msra.mxu0 0.0
    %1806 = vmatprep.mubr.f32.mxu0 0.0
    %1807 = vmatmul.mubr.f32.gmra.mrb[0].mxu0 %v1740
    %v1808 = vpop.f32.mrb[0].mxu0
    %v1809 = vadd.f32 0.0, %v1808
    %v1810 = vpop.f32.mrb[0].mxu0
    %1811 = vdwg.mxu0
    %v1812 = vadd.f32 %v1739, %v1809
    %v1813 = vxor.u32 %v1812, 2147483648
    %v1814 = vmul.f32 %v1813, 1.442695
    %v1815 = vpow.pop %v1814
    %v1816 = vadd.f32 %v1815, 1.0
    %v1817 = vrcp.pop %v1816
    %v1818 = vmul.f32 1.0, %v1817
    %v1819 = vmul.f32 %v1818, 2.0
    %v1820 = vsub.f32 %v1819, 1.0
    %v1821 = vmul.f32 %v1818, %v1727
    %1823 = vrot.lane.b32.xlu0 %v1820, 64
    %v1824 = vpop.permute.xlu0 %1823
    %v1826 = vmul.f32 %v1818, %v1824
    %1828 = vrot.lane.b32.xlu0 %v1826, 32
    %v1829 = vpop.permute.xlu0 %1828
    %v1831 = vadd.f32 %v1821, %v1829
    %v1832 = vtanh.pop %v1831
    %1834 = vrot.lane.b32.xlu0 %v1832, 64
    %v1835 = vpop.permute.xlu0 %1834
    %v1837 = vmul.f32 %v1818, %v1835
    %1839 = vrot.lane.b32.xlu0 %v1837, 32
    %v1840 = vpop.permute.xlu0 %1839
    %1842 = vst.msk [vmem:[#allocation3 + $0x28] sm:$0xff] %vm228, %v1840
    %v1843 = vld [vmem:[#allocation4 + $0x30] sm:$0xff]
    %v1844 = vsel %vm228, %v1840, 0
    %1846 = vmatprep.subr.mxu0 0.0
    %1847 = vmatpush1.msra.mxu0 %v1217
    %1848 = vmatprep.subr.mxu0 0.0
    %1849 = vmatpush1.msra.mxu0 %v1218
    %1850 = vmatprep.subr.mxu0 0.0
    %1851 = vmatpush1.msra.mxu0 %v1219
    %1852 = vmatprep.subr.mxu0 0.0
    %1853 = vmatpush1.msra.mxu0 %v1220
    %1854 = vmatprep.subr.mxu0 0.0
    %1855 = vmatpush1.msra.mxu0 0.0
    %1856 = vmatprep.subr.mxu0 0.0
    %1857 = vmatpush1.msra.mxu0 0.0
    %1858 = vmatprep.subr.mxu0 0.0
    %1859 = vmatpush1.msra.mxu0 0.0
    %1860 = vmatprep.subr.mxu0 0.0
    %1861 = vmatpush1.msra.mxu0 0.0
    %1862 = vmatprep.subr.mxu0 0.0
    %1863 = vmatpush1.msra.mxu0 0.0
    %1864 = vmatprep.subr.mxu0 0.0
    %1865 = vmatpush1.msra.mxu0 0.0
    %1866 = vmatprep.subr.mxu0 0.0
    %1867 = vmatpush1.msra.mxu0 0.0
    %1868 = vmatprep.subr.mxu0 0.0
    %1869 = vmatpush1.msra.mxu0 0.0
    %1870 = vmatprep.subr.mxu0 0.0
    %1871 = vmatpush1.msra.mxu0 0.0
    %1872 = vmatprep.subr.mxu0 0.0
    %1873 = vmatpush1.msra.mxu0 0.0
    %1874 = vmatprep.subr.mxu0 0.0
    %1875 = vmatpush1.msra.mxu0 0.0
    %1876 = vmatprep.subr.mxu0 0.0
    %1877 = vmatpush1.msra.mxu0 0.0
    %1878 = vmatprep.subr.mxu0 0.0
    %1879 = vmatpush1.msra.mxu0 0.0
    %1880 = vmatprep.subr.mxu0 0.0
    %1881 = vmatpush1.msra.mxu0 0.0
    %1882 = vmatprep.subr.mxu0 0.0
    %1883 = vmatpush1.msra.mxu0 0.0
    %1884 = vmatprep.subr.mxu0 0.0
    %1885 = vmatpush1.msra.mxu0 0.0
    %1886 = vmatprep.subr.mxu0 0.0
    %1887 = vmatpush1.msra.mxu0 0.0
    %1888 = vmatprep.subr.mxu0 0.0
    %1889 = vmatpush1.msra.mxu0 0.0
    %1890 = vmatprep.subr.mxu0 0.0
    %1891 = vmatpush1.msra.mxu0 0.0
    %1892 = vmatprep.subr.mxu0 0.0
    %1893 = vmatpush1.msra.mxu0 0.0
    %1894 = vmatprep.subr.mxu0 0.0
    %1895 = vmatpush1.msra.mxu0 0.0
    %1896 = vmatprep.subr.mxu0 0.0
    %1897 = vmatpush1.msra.mxu0 0.0
    %1898 = vmatprep.subr.mxu0 0.0
    %1899 = vmatpush1.msra.mxu0 0.0
    %1900 = vmatprep.subr.mxu0 0.0
    %1901 = vmatpush1.msra.mxu0 0.0
    %1902 = vmatprep.subr.mxu0 0.0
    %1903 = vmatpush1.msra.mxu0 0.0
    %1904 = vmatprep.subr.mxu0 0.0
    %1905 = vmatpush1.msra.mxu0 0.0
    %1906 = vmatprep.subr.mxu0 0.0
    %1907 = vmatpush1.msra.mxu0 0.0
    %1908 = vmatprep.subr.mxu0 0.0
    %1909 = vmatpush1.msra.mxu0 0.0
    %1910 = vmatprep.mubr.f32.mxu0 0.0
    %1911 = vmatmul.mubr.f32.gmra.mrb[0].mxu0 %v1844
    %v1912 = vpop.f32.mrb[0].mxu0
    %v1913 = vadd.f32 0.0, %v1912
    %v1914 = vpop.f32.mrb[0].mxu0
    %1915 = vdwg.mxu0
    %v1916 = vadd.f32 %v1843, %v1913
    %v1917 = vxor.u32 %v1916, 2147483648
    %v1918 = vmul.f32 %v1917, 1.442695
    %v1919 = vpow.pop %v1918
    %v1920 = vadd.f32 %v1919, 1.0
    %v1921 = vrcp.pop %v1920
    %v1922 = vmul.f32 1.0, %v1921
    %v1923 = vmul.f32 %v1922, 2.0
    %v1924 = vsub.f32 %v1923, 1.0
    %v1925 = vmul.f32 %v1922, %v1831
    %1927 = vrot.lane.b32.xlu0 %v1924, 64
    %v1928 = vpop.permute.xlu0 %1927
    %v1930 = vmul.f32 %v1922, %v1928
    %1932 = vrot.lane.b32.xlu0 %v1930, 32
    %v1933 = vpop.permute.xlu0 %1932
    %v1935 = vadd.f32 %v1925, %v1933
    %v1936 = vtanh.pop %v1935
    %1938 = vrot.lane.b32.xlu0 %v1936, 64
    %v1939 = vpop.permute.xlu0 %1938
    %v1941 = vmul.f32 %v1922, %v1939
    %1943 = vrot.lane.b32.xlu0 %v1941, 32
    %v1944 = vpop.permute.xlu0 %1943
    %1946 = vst.msk [vmem:[#allocation3 + $0x30] sm:$0xff] %vm228, %v1944
    %v1947 = vld [vmem:[#allocation4 + $0x38] sm:$0xff]
    %v1948 = vsel %vm228, %v1944, 0
    %1950 = vmatprep.subr.mxu0 0.0
    %1951 = vmatpush1.msra.mxu0 %v1217
    %1952 = vmatprep.subr.mxu0 0.0
    %1953 = vmatpush1.msra.mxu0 %v1218
    %1954 = vmatprep.subr.mxu0 0.0
    %1955 = vmatpush1.msra.mxu0 %v1219
    %1956 = vmatprep.subr.mxu0 0.0
    %1957 = vmatpush1.msra.mxu0 %v1220
    %1958 = vmatprep.subr.mxu0 0.0
    %1959 = vmatpush1.msra.mxu0 0.0
    %1960 = vmatprep.subr.mxu0 0.0
    %1961 = vmatpush1.msra.mxu0 0.0
    %1962 = vmatprep.subr.mxu0 0.0
    %1963 = vmatpush1.msra.mxu0 0.0
    %1964 = vmatprep.subr.mxu0 0.0
    %1965 = vmatpush1.msra.mxu0 0.0
    %1966 = vmatprep.subr.mxu0 0.0
    %1967 = vmatpush1.msra.mxu0 0.0
    %1968 = vmatprep.subr.mxu0 0.0
    %1969 = vmatpush1.msra.mxu0 0.0
    %1970 = vmatprep.subr.mxu0 0.0
    %1971 = vmatpush1.msra.mxu0 0.0
    %1972 = vmatprep.subr.mxu0 0.0
    %1973 = vmatpush1.msra.mxu0 0.0
    %1974 = vmatprep.subr.mxu0 0.0
    %1975 = vmatpush1.msra.mxu0 0.0
    %1976 = vmatprep.subr.mxu0 0.0
    %1977 = vmatpush1.msra.mxu0 0.0
    %1978 = vmatprep.subr.mxu0 0.0
    %1979 = vmatpush1.msra.mxu0 0.0
    %1980 = vmatprep.subr.mxu0 0.0
    %1981 = vmatpush1.msra.mxu0 0.0
    %1982 = vmatprep.subr.mxu0 0.0
    %1983 = vmatpush1.msra.mxu0 0.0
    %1984 = vmatprep.subr.mxu0 0.0
    %1985 = vmatpush1.msra.mxu0 0.0
    %1986 = vmatprep.subr.mxu0 0.0
    %1987 = vmatpush1.msra.mxu0 0.0
    %1988 = vmatprep.subr.mxu0 0.0
    %1989 = vmatpush1.msra.mxu0 0.0
    %1990 = vmatprep.subr.mxu0 0.0
    %1991 = vmatpush1.msra.mxu0 0.0
    %1992 = vmatprep.subr.mxu0 0.0
    %1993 = vmatpush1.msra.mxu0 0.0
    %1994 = vmatprep.subr.mxu0 0.0
    %1995 = vmatpush1.msra.mxu0 0.0
    %1996 = vmatprep.subr.mxu0 0.0
    %1997 = vmatpush1.msra.mxu0 0.0
    %1998 = vmatprep.subr.mxu0 0.0
    %1999 = vmatpush1.msra.mxu0 0.0
    %2000 = vmatprep.subr.mxu0 0.0
    %2001 = vmatpush1.msra.mxu0 0.0
    %2002 = vmatprep.subr.mxu0 0.0
    %2003 = vmatpush1.msra.mxu0 0.0
    %2004 = vmatprep.subr.mxu0 0.0
    %2005 = vmatpush1.msra.mxu0 0.0
    %2006 = vmatprep.subr.mxu0 0.0
    %2007 = vmatpush1.msra.mxu0 0.0
    %2008 = vmatprep.subr.mxu0 0.0
    %2009 = vmatpush1.msra.mxu0 0.0
    %2010 = vmatprep.subr.mxu0 0.0
    %2011 = vmatpush1.msra.mxu0 0.0
    %2012 = vmatprep.subr.mxu0 0.0
    %2013 = vmatpush1.msra.mxu0 0.0
    %2014 = vmatprep.mubr.f32.mxu0 0.0
    %2015 = vmatmul.mubr.f32.gmra.mrb[0].mxu0 %v1948
    %v2016 = vpop.f32.mrb[0].mxu0
    %v2017 = vadd.f32 0.0, %v2016
    %v2018 = vpop.f32.mrb[0].mxu0
    %2019 = vdwg.mxu0
    %v2020 = vadd.f32 %v1947, %v2017
    %v2021 = vxor.u32 %v2020, 2147483648
    %v2022 = vmul.f32 %v2021, 1.442695
    %v2023 = vpow.pop %v2022
    %v2024 = vadd.f32 %v2023, 1.0
    %v2025 = vrcp.pop %v2024
    %v2026 = vmul.f32 1.0, %v2025
    %v2027 = vmul.f32 %v2026, 2.0
    %v2028 = vsub.f32 %v2027, 1.0
    %v2029 = vmul.f32 %v2026, %v1935
    %2031 = vrot.lane.b32.xlu0 %v2028, 64
    %v2032 = vpop.permute.xlu0 %2031
    %v2034 = vmul.f32 %v2026, %v2032
    %2036 = vrot.lane.b32.xlu0 %v2034, 32
    %v2037 = vpop.permute.xlu0 %2036
    %v2039 = vadd.f32 %v2029, %v2037
    %v2040 = vtanh.pop %v2039
    %2042 = vrot.lane.b32.xlu0 %v2040, 64
    %v2043 = vpop.permute.xlu0 %2042
    %v2045 = vmul.f32 %v2026, %v2043
    %2047 = vrot.lane.b32.xlu0 %v2045, 32
    %v2048 = vpop.permute.xlu0 %2047
    %2050 = vst.msk [vmem:[#allocation3 + $0x38] sm:$0xff] %vm228, %v2048
    %v2051 = vld [vmem:[#allocation3] sm:$0xff]
    %v2052 = vld [vmem:[#allocation3 + $0x8] sm:$0xff]
    %v2053 = vld [vmem:[#allocation3 + $0x10] sm:$0xff]
    %v2054 = vld [vmem:[#allocation3 + $0x18] sm:$0xff]
    %v2055 = vld [vmem:[#allocation3 + $0x20] sm:$0xff]
    %v2056 = vld [vmem:[#allocation3 + $0x28] sm:$0xff]
    %v2057 = vld [vmem:[#allocation3 + $0x30] sm:$0xff]
    %v2058 = vld [vmem:[#allocation3 + $0x38] sm:$0xff]
    %v2059 = vld [vmem:[#allocation8] sm:$0xff]
    %v2060 = vld [vmem:[#allocation8 + $0x8] sm:$0xff]
    %v2061 = vld [vmem:[#allocation8 + $0x10] sm:$0xff]
    %v2062 = vld [vmem:[#allocation8 + $0x18] sm:$0xff]
    %v2063 = vld [vmem:[%s8] sm:$0x1]
    %v2065 = vlaneseq
    %v2066 = vshrl.u32 %v2065, 7
    %v2067 = vsub.s32 0, %v2066
    %v2068 = vrot.slane %v2063, %v2067
    %v2071 = vsel %vm228, %v2051, 0
    %v2074 = vsel %vm228, %v2052, 0
    %v2077 = vsel %vm228, %v2053, 0
    %v2080 = vsel %vm228, %v2054, 0
    %v2083 = vsel %vm228, %v2055, 0
    %v2086 = vsel %vm228, %v2056, 0
    %v2089 = vsel %vm228, %v2057, 0
    %v2092 = vsel %vm228, %v2058, 0
    %2094 = vmatprep.subr.mxu0 0.0
    %2095 = vmatpush1.msra.mxu0 %v2059
    %2096 = vmatprep.subr.mxu0 0.0
    %2097 = vmatpush1.msra.mxu0 %v2060
    %2098 = vmatprep.subr.mxu0 0.0
    %2099 = vmatpush1.msra.mxu0 %v2061
    %2100 = vmatprep.subr.mxu0 0.0
    %2101 = vmatpush1.msra.mxu0 %v2062
    %2102 = vmatprep.subr.mxu0 0.0
    %2103 = vmatpush1.msra.mxu0 0.0
    %2104 = vmatprep.subr.mxu0 0.0
    %2105 = vmatpush1.msra.mxu0 0.0
    %2106 = vmatprep.subr.mxu0 0.0
    %2107 = vmatpush1.msra.mxu0 0.0
    %2108 = vmatprep.subr.mxu0 0.0
    %2109 = vmatpush1.msra.mxu0 0.0
    %2110 = vmatprep.subr.mxu0 0.0
    %2111 = vmatpush1.msra.mxu0 0.0
    %2112 = vmatprep.subr.mxu0 0.0
    %2113 = vmatpush1.msra.mxu0 0.0
    %2114 = vmatprep.subr.mxu0 0.0
    %2115 = vmatpush1.msra.mxu0 0.0
    %2116 = vmatprep.subr.mxu0 0.0
    %2117 = vmatpush1.msra.mxu0 0.0
    %2118 = vmatprep.subr.mxu0 0.0
    %2119 = vmatpush1.msra.mxu0 0.0
    %2120 = vmatprep.subr.mxu0 0.0
    %2121 = vmatpush1.msra.mxu0 0.0
    %2122 = vmatprep.subr.mxu0 0.0
    %2123 = vmatpush1.msra.mxu0 0.0
    %2124 = vmatprep.subr.mxu0 0.0
    %2125 = vmatpush1.msra.mxu0 0.0
    %2126 = vmatprep.subr.mxu0 0.0
    %2127 = vmatpush1.msra.mxu0 0.0
    %2128 = vmatprep.subr.mxu0 0.0
    %2129 = vmatpush1.msra.mxu0 0.0
    %2130 = vmatprep.subr.mxu0 0.0
    %2131 = vmatpush1.msra.mxu0 0.0
    %2132 = vmatprep.subr.mxu0 0.0
    %2133 = vmatpush1.msra.mxu0 0.0
    %2134 = vmatprep.subr.mxu0 0.0
    %2135 = vmatpush1.msra.mxu0 0.0
    %2136 = vmatprep.subr.mxu0 0.0
    %2137 = vmatpush1.msra.mxu0 0.0
    %2138 = vmatprep.subr.mxu0 0.0
    %2139 = vmatpush1.msra.mxu0 0.0
    %2140 = vmatprep.subr.mxu0 0.0
    %2141 = vmatpush1.msra.mxu0 0.0
    %2142 = vmatprep.subr.mxu0 0.0
    %2143 = vmatpush1.msra.mxu0 0.0
    %2144 = vmatprep.subr.mxu0 0.0
    %2145 = vmatpush1.msra.mxu0 0.0
    %2146 = vmatprep.subr.mxu0 0.0
    %2147 = vmatpush1.msra.mxu0 0.0
    %2148 = vmatprep.subr.mxu0 0.0
    %2149 = vmatpush1.msra.mxu0 0.0
    %2150 = vmatprep.subr.mxu0 0.0
    %2151 = vmatpush1.msra.mxu0 0.0
    %2152 = vmatprep.subr.mxu0 0.0
    %2153 = vmatpush1.msra.mxu0 0.0
    %2154 = vmatprep.subr.mxu0 0.0
    %2155 = vmatpush1.msra.mxu0 0.0
    %2156 = vmatprep.subr.mxu0 0.0
    %2157 = vmatpush1.msra.mxu0 0.0
    %2158 = vmatprep.mubr.f32.mxu0 0.0
    %2159 = vmatmul.mubr.f32.gmra.mrb[0].mxu0 %v2071
    %v2160 = vpop.f32.mrb[0].mxu0
    %v2161 = vadd.f32 %v2068, %v2160
    %v2162 = vpop.f32.mrb[0].mxu0
    %2163 = vmatprep.mubr.f32.mxu0 0.0
    %2164 = vmatmul.mubr.f32.gmra.mrb[0].mxu0 %v2074
    %v2165 = vpop.f32.mrb[0].mxu0
    %v2166 = vadd.f32 %v2068, %v2165
    %v2167 = vpop.f32.mrb[0].mxu0
    %2168 = vmatprep.mubr.f32.mxu0 0.0
    %2169 = vmatmul.mubr.f32.gmra.mrb[0].mxu0 %v2077
    %v2170 = vpop.f32.mrb[0].mxu0
    %v2171 = vadd.f32 %v2068, %v2170
    %v2172 = vpop.f32.mrb[0].mxu0
    %2173 = vmatprep.mubr.f32.mxu0 0.0
    %2174 = vmatmul.mubr.f32.gmra.mrb[0].mxu0 %v2080
    %v2175 = vpop.f32.mrb[0].mxu0
    %v2176 = vadd.f32 %v2068, %v2175
    %v2177 = vpop.f32.mrb[0].mxu0
    %2178 = vmatprep.mubr.f32.mxu0 0.0
    %2179 = vmatmul.mubr.f32.gmra.mrb[0].mxu0 %v2083
    %v2180 = vpop.f32.mrb[0].mxu0
    %v2181 = vadd.f32 %v2068, %v2180
    %v2182 = vpop.f32.mrb[0].mxu0
    %2183 = vmatprep.mubr.f32.mxu0 0.0
    %2184 = vmatmul.mubr.f32.gmra.mrb[0].mxu0 %v2086
    %v2185 = vpop.f32.mrb[0].mxu0
    %v2186 = vadd.f32 %v2068, %v2185
    %v2187 = vpop.f32.mrb[0].mxu0
    %2188 = vmatprep.mubr.f32.mxu0 0.0
    %2189 = vmatmul.mubr.f32.gmra.mrb[0].mxu0 %v2089
    %v2190 = vpop.f32.mrb[0].mxu0
    %v2191 = vadd.f32 %v2068, %v2190
    %v2192 = vpop.f32.mrb[0].mxu0
    %2193 = vmatprep.mubr.f32.mxu0 0.0
    %2194 = vmatmul.mubr.f32.gmra.mrb[0].mxu0 %v2092
    %v2195 = vpop.f32.mrb[0].mxu0
    %v2196 = vadd.f32 %v2068, %v2195
    %v2197 = vpop.f32.mrb[0].mxu0
    %2198 = vdwg.mxu0
    %v2199 = vmax.f32 %v2161, 0.0
    %v2200 = vmax.f32 %v2166, 0.0
    %v2201 = vmax.f32 %v2171, 0.0
    %v2202 = vmax.f32 %v2176, 0.0
    %v2203 = vmax.f32 %v2181, 0.0
    %v2204 = vmax.f32 %v2186, 0.0
    %v2205 = vmax.f32 %v2191, 0.0
    %v2206 = vmax.f32 %v2196, 0.0
    %v2207 = vld [vmem:[%s9] sm:$0x1]
    %v2209 = vlaneseq
    %v2210 = vshrl.u32 %v2209, 7
    %v2211 = vsub.s32 0, %v2210
    %v2212 = vrot.slane %v2207, %v2211
    %v2214 = vmul.f32 %v2199, %v2212
    %v2215 = vmul.f32 %v2200, %v2212
    %v2216 = vmul.f32 %v2201, %v2212
    %v2217 = vmul.f32 %v2202, %v2212
    %v2218 = vmul.f32 %v2203, %v2212
    %v2219 = vmul.f32 %v2204, %v2212
    %v2220 = vmul.f32 %v2205, %v2212
    %v2221 = vmul.f32 %v2206, %v2212
    %v2222 = vsel %vm228, %v2214, 0.0
    %2223 = vadd.xlane.f32.xlu0 %v2222
    %v2224 = vpop.xlane.xlu0 %2223
    %v2225 = vsel %vm228, %v2215, 0.0
    %2226 = vadd.xlane.f32.xlu0 %v2225
    %v2227 = vpop.xlane.xlu0 %2226
    %v2228 = vsel %vm228, %v2216, 0.0
    %2229 = vadd.xlane.f32.xlu0 %v2228
    %v2230 = vpop.xlane.xlu0 %2229
    %v2231 = vsel %vm228, %v2217, 0.0
    %2232 = vadd.xlane.f32.xlu0 %v2231
    %v2233 = vpop.xlane.xlu0 %2232
    %v2234 = vsel %vm228, %v2218, 0.0
    %2235 = vadd.xlane.f32.xlu0 %v2234
    %v2236 = vpop.xlane.xlu0 %2235
    %v2237 = vsel %vm228, %v2219, 0.0
    %2238 = vadd.xlane.f32.xlu0 %v2237
    %v2239 = vpop.xlane.xlu0 %2238
    %v2240 = vsel %vm228, %v2220, 0.0
    %2241 = vadd.xlane.f32.xlu0 %v2240
    %v2242 = vpop.xlane.xlu0 %2241
    %v2243 = vsel %vm228, %v2221, 0.0
    %2244 = vadd.xlane.f32.xlu0 %v2243
    %v2245 = vpop.xlane.xlu0 %2244
    %v2246 = vld [vmem:[#allocation5] sm:$0x1]
    %v2248 = vlaneseq
    %v2249 = vshrl.u32 %v2248, 7
    %v2250 = vsub.s32 0, %v2249
    %v2251 = vrot.slane %v2246, %v2250
    %v2253 = vadd.f32 %v2224, %v2251
    %v2254 = vadd.f32 %v2227, %v2251
    %v2255 = vadd.f32 %v2230, %v2251
    %v2256 = vadd.f32 %v2233, %v2251
    %v2257 = vadd.f32 %v2236, %v2251
    %v2258 = vadd.f32 %v2239, %v2251
    %v2259 = vadd.f32 %v2242, %v2251
    %v2260 = vadd.f32 %v2245, %v2251
    %vm2261 = vcmask 7168
    %2262 = vst.msk [vmem:[%s11] sm:$0xff] %vm2261, %v2253
    %2263 = vst.msk [vmem:[%s11 + $0x8] sm:$0xff] %vm2261, %v2254
    %2264 = vst.msk [vmem:[%s11 + $0x10] sm:$0xff] %vm2261, %v2255
    %2265 = vst.msk [vmem:[%s11 + $0x18] sm:$0xff] %vm2261, %v2256
    %2266 = vst.msk [vmem:[%s11 + $0x20] sm:$0xff] %vm2261, %v2257
    %2267 = vst.msk [vmem:[%s11 + $0x28] sm:$0xff] %vm2261, %v2258
    %2268 = vst.msk [vmem:[%s11 + $0x30] sm:$0xff] %vm2261, %v2259
    %2269 = vst.msk [vmem:[%s11 + $0x38] sm:$0xff] %vm2261, %v2260
    // Predicated region
    $region54: #{tpu_custom_call.1} parent=1 // pred_check
      _
    $region55: #{tpu_custom_call.1} parent=1 // pred_check_branch
      %2271 = sbr.rel (0) target = $region57
    $region56: #{tpu_custom_call.1} parent=1 // pred_region
      _
    $region57: #{tpu_custom_call.1} parent=1 // pred_fallthru
      _
    // Predicated region
    $region58: #{tpu_custom_call.1} parent=1 // pred_check
      _
    $region59: #{tpu_custom_call.1} parent=1 // pred_check_branch
      %2273 = sbr.rel (0) target = $region61
    $region60: #{tpu_custom_call.1} parent=1 // pred_region
      _
    $region61: #{tpu_custom_call.1} parent=1 // pred_fallthru
      _
    %2274 = vsyncpa [#allocation7], 1
    %2275 = vsyncpa [#allocation9], 1

</llo_original>
